<compile_context>
chip_gen: v7x
topology: tpu7x:2x2x1
jax: 0.10.0
libtpu: 0.0.40
codegen_flags: <defaults>
</compile_context>

<pallas_src>
import math

import jax
import jax.numpy as jnp
import numpy as np
from jax import lax
from jax.experimental import pallas as pl
from jax.experimental.pallas import tpu as pltpu

# --- model hyper-params (small, consistent with the module) ---------------
D = 32            # dim_model
H = 4             # num_heads
DH = D // H       # head dim
FF = 4 * D        # dim_feedforward
S = 8             # sequence length (power of two -> cheap batch-block mask)
B = 2             # batch
N = B * S         # flattened rows per kernel invocation
MAX_LEN = 128
LN_EPS = 1e-5
SQRT_D = math.sqrt(D)
ATTN_SCALE = 1.0 / math.sqrt(DH)
NEG_INF = -1e30

# --- packed weight slab layout: (W_ROWS, 128) f32 --------------------------
WQKV_ROW = 0              # rows [0,   32): Wqkv^T (D, 3D)          cols [0, 96)
WO_ROW = D                # rows [32,  64): Wo^T   (D, D)           cols [0, 32)
W1_ROW = 2 * D            # rows [64,  96): W1^T   (D, FF)          cols [0, 128)
W2_ROW = 3 * D            # rows [96, 128): W2     (D, FF) as-is    cols [0, 128)
WOUT_ROW = 4 * D          # rows [128,160): Wout^T (D, 1)           cols [0, 1)
W_ROWS = 5 * D            # 160 (was 256 before the lane-dense W2 repack)
W_LANES = 128

# --- packed bias / LN slab layout: (B_ROWS, 128) f32 ------------------------
(B_QKV, B_O, B_LN1G, B_LN1B, B_FF1, B_FF2, B_LN2G, B_LN2B, B_OUT) = range(9)
B_ROWS = 16


def _layernorm(y, g, b):
    mu = jnp.mean(y, axis=-1, keepdims=True)
    var = jnp.mean((y - mu) ** 2, axis=-1, keepdims=True)
    return (y - mu) * lax.rsqrt(var + LN_EPS) * g + b


# --------------------------------------------------------------------------
# Pallas kernel: the whole (B, S) batch in a single invocation.
# --------------------------------------------------------------------------
def rnabert_kernel(x_ref, pos_ref, w_ref, b_ref, o_ref):
    f32 = jnp.float32

    # embedding(x) * sqrt(D) + positional encoding     (dropout = identity)
    x = x_ref[...] * f32(SQRT_D) + pos_ref[...]                      # (N, D)

    # ---- fused Q/K/V projection: one (N, D) x (D, 3D) MXU push ----
    qkv = jnp.dot(x, w_ref[WQKV_ROW:WQKV_ROW + D, 0:3 * D],
                  preferred_element_type=f32) + b_ref[B_QKV:B_QKV + 1, 0:3 * D]

    # ---- block-diagonal batch mask over the flattened N rows ----
    # rows n and m may attend iff they belong to the same sequence
    # (n // S == m // S).  S is a power of two -> use a bit-mask, no int div.
    blk = jnp.int32(-S)
    row_b = lax.broadcasted_iota(jnp.int32, (N, N), 0) & blk
    col_b = lax.broadcasted_iota(jnp.int32, (N, N), 1) & blk
    neg_mask = jnp.where(row_b == col_b, 0.0, NEG_INF).astype(f32)    # (N, N)

    # ---- multi-head self-attention over the full N-row slab ----
    # Per head: two 2-D MXU pushes (scores, context) + one softmax chain.
    # Heads are independent -> unrolled chains overlap; contexts are
    # lane-concatenated once and go through a single Wo matmul.
    ctx_heads = []
    for h in range(H):                                # static unroll, 4 heads
        q_h = qkv[:, h * DH:(h + 1) * DH]                            # (N, DH)
        k_h = qkv[:, D + h * DH:D + (h + 1) * DH]
        v_h = qkv[:, 2 * D + h * DH:2 * D + (h + 1) * DH]
        # scores = q_h @ k_h^T  (contract last dims: trans_b dot, one push)
        s = lax.dot_general(q_h, k_h, (((1,), (1,)), ((), ())),
                            preferred_element_type=f32) * f32(ATTN_SCALE)
        s = s + neg_mask                                             # (N, N)
        s = s - jnp.max(s, axis=-1, keepdims=True)
        e = jnp.exp(s)
        p = e * pl.reciprocal(jnp.sum(e, axis=-1, keepdims=True), approx=True)
        ctx_heads.append(jnp.dot(p, v_h, preferred_element_type=f32))  # (N, DH)
    ctx = jnp.concatenate(ctx_heads, axis=-1)                         # (N, D)
    attn = jnp.dot(ctx, w_ref[WO_ROW:WO_ROW + D, 0:D],
                   preferred_element_type=f32) + b_ref[B_O:B_O + 1, 0:D]

    # ---- residual + LayerNorm 1 (post-LN) ----
    y = _layernorm(x + attn,
                   b_ref[B_LN1G:B_LN1G + 1, 0:D],
                   b_ref[B_LN1B:B_LN1B + 1, 0:D])

    # ---- feed-forward (Linear -> ReLU -> Linear) ----
    f = jnp.dot(y, w_ref[W1_ROW:W1_ROW + D, 0:FF],
                preferred_element_type=f32) + b_ref[B_FF1:B_FF1 + 1, 0:FF]
    f = jnp.maximum(f, 0.0)
    # W2 stored lane-dense as (D, FF); contract the FF dims directly (f @ W2^T)
    f = lax.dot_general(f, w_ref[W2_ROW:W2_ROW + D, 0:FF],
                        (((1,), (1,)), ((), ())),
                        preferred_element_type=f32) + b_ref[B_FF2:B_FF2 + 1, 0:D]

    # ---- residual + LayerNorm 2 ----
    z = _layernorm(y + f,
                   b_ref[B_LN2G:B_LN2G + 1, 0:D],
                   b_ref[B_LN2B:B_LN2B + 1, 0:D])

    # ---- output head D -> 1 (tiny masked store; review: leave as-is) ----
    out = jnp.dot(z, w_ref[WOUT_ROW:WOUT_ROW + D, 0:1],
                  preferred_element_type=f32) + b_ref[B_OUT:B_OUT + 1, 0:1]
    o_ref[...] = out                                                   # (N, 1)


# --------------------------------------------------------------------------
# Wrapper
# --------------------------------------------------------------------------
def rnabert_forward(tokens, p):
    emb = p["embedding"][tokens].reshape(N, D)          # gather + flatten = glue
    pos = jnp.tile(p["pos_encoding"][:S], (B, 1))       # (N, D) layout glue

    out = pl.pallas_call(
        rnabert_kernel,
        out_shape=jax.ShapeDtypeStruct((N, 1), jnp.float32),
        grid_spec=pltpu.PrefetchScalarGridSpec(
            num_scalar_prefetch=0,
            grid=(1,),                                   # whole batch, one step
            in_specs=[
                pl.BlockSpec((N, D), lambda i: (0, 0)),             # activations
                pl.BlockSpec((N, D), lambda i: (0, 0)),             # pos encoding
                pl.BlockSpec((W_ROWS, W_LANES), lambda i: (0, 0)),  # weight slab
                pl.BlockSpec((B_ROWS, W_LANES), lambda i: (0, 0)),  # bias/LN slab
            ],
            out_specs=pl.BlockSpec((N, 1), lambda i: (0, 0)),
        ),
        compiler_params=pltpu.CompilerParams(
            dimension_semantics=("arbitrary",)),
    )(emb, pos, p["w_slab"], p["b_slab"])

    # (B*S, 1) -> (S, B, 1) to match PyTorch's seq-first output convention
    return jnp.transpose(out.reshape(B, S, 1), (1, 0, 2))


# --------------------------------------------------------------------------
# Deterministic parameter construction (shapes from RNABERT.__init__)
# --------------------------------------------------------------------------
def make_params(key):
    ks = jax.random.split(key, 11)

    def lin(k, fan_in, shape):
        bound = 1.0 / math.sqrt(fan_in)
        return jax.random.uniform(k, shape, jnp.float32, -bound, bound)

    # sinusoidal positional encoding (note: base 1000.0 as in the module)
    positions = jnp.arange(MAX_LEN, dtype=jnp.float32)[:, None]
    div = jnp.exp(jnp.arange(0, D, 2, dtype=jnp.float32) * (-math.log(1000.0) / D))
    pe = jnp.zeros((MAX_LEN, D), jnp.float32)
    pe = pe.at[:, 0::2].set(jnp.sin(positions * div))
    pe = pe.at[:, 1::2].set(jnp.cos(positions * div))

    in_proj_w = lin(ks[1], D, (3 * D, D))      # PyTorch in_proj_weight (3D, D)
    in_proj_b = lin(ks[2], D, (3 * D,))

    p = dict(
        embedding=jax.random.normal(ks[0], (6, D), jnp.float32),
        pos_encoding=pe,
        wqkv_t=in_proj_w.T,                         # (D, 3D)
        bqkv=in_proj_b.reshape(1, 3 * D),
        wo_t=lin(ks[3], D, (D, D)).T, bo=lin(ks[4], D, (D,)).reshape(1, D),
        ln1_g=jnp.ones((1, D), jnp.float32), ln1_b=jnp.zeros((1, D), jnp.float32),
        w1_t=lin(ks[5], D, (FF, D)).T, b1=lin(ks[6], D, (FF,)).reshape(1, FF),
        w2_t=lin(ks[7], FF, (D, FF)).T, b2=lin(ks[8], FF, (D,)).reshape(1, D),
        ln2_g=jnp.ones((1, D), jnp.float32), ln2_b=jnp.zeros((1, D), jnp.float32),
        wout_t=lin(ks[9], D, (1, D)).T, bout=lin(ks[10], D, (1,)).reshape(1, 1),
    )

    # ---- pack all weights into one (160, 128) VMEM slab -------------------
    w_slab = np.zeros((W_ROWS, W_LANES), np.float32)
    w_slab[WQKV_ROW:WQKV_ROW + D, 0:3 * D] = np.asarray(p["wqkv_t"])
    w_slab[WO_ROW:WO_ROW + D, 0:D] = np.asarray(p["wo_t"])
    w_slab[W1_ROW:W1_ROW + D, 0:FF] = np.asarray(p["w1_t"])
    # W2 lane-dense: store the (D, FF) torch weight un-transposed.
    w_slab[W2_ROW:W2_ROW + D, 0:FF] = np.asarray(p["w2_t"]).T
    w_slab[WOUT_ROW:WOUT_ROW + D, 0:1] = np.asarray(p["wout_t"])

    # ---- pack all biases / LN vectors into one (16, 128) slab -------------
    b_slab = np.zeros((B_ROWS, W_LANES), np.float32)
    b_slab[B_QKV, 0:3 * D] = np.asarray(p["bqkv"])[0]
    b_slab[B_O, 0:D] = np.asarray(p["bo"])[0]
    b_slab[B_LN1G, 0:D] = np.asarray(p["ln1_g"])[0]
    b_slab[B_LN1B, 0:D] = np.asarray(p["ln1_b"])[0]
    b_slab[B_FF1, 0:FF] = np.asarray(p["b1"])[0]
    b_slab[B_FF2, 0:D] = np.asarray(p["b2"])[0]
    b_slab[B_LN2G, 0:D] = np.asarray(p["ln2_g"])[0]
    b_slab[B_LN2B, 0:D] = np.asarray(p["ln2_b"])[0]
    b_slab[B_OUT, 0:1] = np.asarray(p["bout"])[0]

    p["w_slab"] = jnp.asarray(w_slab)
    p["b_slab"] = jnp.asarray(b_slab)
    return p


# --------------------------------------------------------------------------
# Pure-JAX reference (same math, exact softmax) for correctness check
# --------------------------------------------------------------------------
def rnabert_ref(tokens, p):
    x = p["embedding"][tokens] * SQRT_D + p["pos_encoding"][:S][None]    # (B,S,D)

    def one(xb):
        qkv = xb @ p["wqkv_t"] + p["bqkv"]
        q, k, v = qkv[:, :D], qkv[:, D:2 * D], qkv[:, 2 * D:]
        outs = []
        for h in range(H):
            sl = slice(h * DH, (h + 1) * DH)
            s = (q[:, sl] @ k[:, sl].T) * ATTN_SCALE
            pr = jax.nn.softmax(s, axis=-1)
            outs.append(pr @ v[:, sl])
        a = jnp.concatenate(outs, axis=-1) @ p["wo_t"] + p["bo"]
        y = _layernorm(xb + a, p["ln1_g"], p["ln1_b"])
        f = jnp.maximum(y @ p["w1_t"] + p["b1"], 0.0) @ p["w2_t"] + p["b2"]
        z = _layernorm(y + f, p["ln2_g"], p["ln2_b"])
        return z @ p["wout_t"] + p["bout"]

    return jnp.transpose(jax.vmap(one)(x), (1, 0, 2))


if __name__ == "__main__":
    key = jax.random.PRNGKey(0)
    pkey, tkey = jax.random.split(key)
    params = make_params(pkey)
    tokens = jax.random.randint(tkey, (B, S), 0, 6, dtype=jnp.int32)

    out = jax.block_until_ready(rnabert_forward(tokens, params))
    ref = jax.block_until_ready(rnabert_ref(tokens, params))

    assert out.shape == (S, B, 1), out.shape
    np.testing.assert_allclose(np.asarray(out), np.asarray(ref), rtol=5e-3, atol=5e-3)
    print("KERNEL_OK")
</pallas_src>

<mosaic_0001>
module attributes {stable_mosaic.version = 11 : i64} {
  func.func @rnabert_kernel(%arg0: i32, %arg1: memref<16x32xf32, #tpu.memory_space<vmem>>, %arg2: memref<16x32xf32, #tpu.memory_space<vmem>>, %arg3: memref<160x128xf32, #tpu.memory_space<vmem>>, %arg4: memref<16x128xf32, #tpu.memory_space<vmem>>, %arg5: memref<16x1xf32, #tpu.memory_space<vmem>>) attributes {dimension_semantics = [#tpu.dimension_semantics<arbitrary>], iteration_bounds = array<i64: 1>, scalar_prefetch = 0 : i64, scratch_operands = 0 : i64, tpu.core_type = #tpu.core_type<tc>, window_params = [{pipeline_mode = #tpu.pipeline_mode<synchronous>, transform_indices = @transform_0, window_bounds = array<i64: 16, 32>}, {pipeline_mode = #tpu.pipeline_mode<synchronous>, transform_indices = @transform_1, window_bounds = array<i64: 16, 32>}, {pipeline_mode = #tpu.pipeline_mode<synchronous>, transform_indices = @transform_2, window_bounds = array<i64: 160, 128>}, {pipeline_mode = #tpu.pipeline_mode<synchronous>, transform_indices = @transform_3, window_bounds = array<i64: 16, 128>}, {pipeline_mode = #tpu.pipeline_mode<synchronous>, transform_indices = @transform_4, window_bounds = array<i64: 16, 1>}]} {
    %c0 = arith.constant 0 : index
    %c0_0 = arith.constant 0 : index
    %0 = vector.load %arg1[%c0, %c0_0] : memref<16x32xf32, #tpu.memory_space<vmem>>, vector<16x32xf32>
    %cst = arith.constant 5.65685415 : f32
    %1 = vector.broadcast %cst : f32 to vector<16x32xf32>
    %2 = arith.mulf %0, %1 : vector<16x32xf32>
    %c0_1 = arith.constant 0 : index
    %c0_2 = arith.constant 0 : index
    %3 = vector.load %arg2[%c0_1, %c0_2] : memref<16x32xf32, #tpu.memory_space<vmem>>, vector<16x32xf32>
    %4 = arith.addf %2, %3 : vector<16x32xf32>
    %c0_3 = arith.constant 0 : index
    %c0_4 = arith.constant 0 : index
    %5 = vector.load %arg3[%c0_3, %c0_4] : memref<160x128xf32, #tpu.memory_space<vmem>>, vector<32x96xf32>
    %cst_5 = arith.constant dense<0.000000e+00> : vector<16x96xf32>
    %6 = tpu.matmul %4, %5, %cst_5 {dimension_numbers = #tpu.dot_dimension_numbers<[1], [0], [0], [1], [0, 0, 1, 1], [], []>} : vector<16x32xf32>, vector<32x96xf32>, vector<16x96xf32> -> vector<16x96xf32>
    %c0_6 = arith.constant 0 : index
    %c0_7 = arith.constant 0 : index
    %7 = vector.load %arg4[%c0_6, %c0_7] : memref<16x128xf32, #tpu.memory_space<vmem>>, vector<1x96xf32>
    %8 = vector.broadcast %7 : vector<1x96xf32> to vector<16x96xf32>
    %9 = arith.addf %6, %8 : vector<16x96xf32>
    %10 = tpu.iota {dimensions = array<i32: 0>} : vector<16x16xi32>
    %c-8_i32 = arith.constant -8 : i32
    %11 = vector.broadcast %c-8_i32 : i32 to vector<16x16xi32>
    %12 = arith.andi %10, %11 : vector<16x16xi32>
    %13 = tpu.iota {dimensions = array<i32: 1>} : vector<16x16xi32>
    %c-8_i32_8 = arith.constant -8 : i32
    %14 = vector.broadcast %c-8_i32_8 : i32 to vector<16x16xi32>
    %15 = arith.andi %13, %14 : vector<16x16xi32>
    %16 = arith.cmpi eq, %12, %15 : vector<16x16xi32>
    %cst_9 = arith.constant 0.000000e+00 : f32
    %cst_10 = arith.constant -1.000000e+30 : f32
    %17 = vector.broadcast %cst_9 : f32 to vector<16x16xf32>
    %18 = vector.broadcast %cst_10 : f32 to vector<16x16xf32>
    %19 = arith.select %16, %17, %18 : vector<16x16xi1>, vector<16x16xf32>
    %20 = vector.extract_strided_slice %9 {offsets = [0, 0], sizes = [16, 8], strides = [1, 1]} : vector<16x96xf32> to vector<16x8xf32>
    %21 = vector.extract_strided_slice %9 {offsets = [0, 32], sizes = [16, 8], strides = [1, 1]} : vector<16x96xf32> to vector<16x8xf32>
    %22 = vector.extract_strided_slice %9 {offsets = [0, 64], sizes = [16, 8], strides = [1, 1]} : vector<16x96xf32> to vector<16x8xf32>
    %cst_11 = arith.constant dense<0.000000e+00> : vector<16x16xf32>
    %23 = tpu.matmul %20, %21, %cst_11 {dimension_numbers = #tpu.dot_dimension_numbers<[1], [1], [0], [0], [0, 0, 1, 0], [], []>} : vector<16x8xf32>, vector<16x8xf32>, vector<16x16xf32> -> vector<16x16xf32>
    %cst_12 = arith.constant 0.353553385 : f32
    %24 = vector.broadcast %cst_12 : f32 to vector<16x16xf32>
    %25 = arith.mulf %23, %24 : vector<16x16xf32>
    %26 = arith.addf %25, %19 : vector<16x16xf32>
    %cst_13 = arith.constant dense<0xFF800000> : vector<16xf32>
    %27 = vector.multi_reduction <maximumf>, %26, %cst_13 [1] : vector<16x16xf32> to vector<16xf32>
    %28 = vector.shape_cast %27 : vector<16xf32> to vector<16x1xf32>
    %29 = vector.broadcast %28 : vector<16x1xf32> to vector<16x16xf32>
    %30 = arith.subf %26, %29 : vector<16x16xf32>
    %31 = math.exp %30 : vector<16x16xf32>
    %cst_14 = arith.constant dense<0.000000e+00> : vector<16xf32>
    %32 = vector.multi_reduction <add>, %31, %cst_14 [1] : vector<16x16xf32> to vector<16xf32>
    %33 = vector.shape_cast %32 : vector<16xf32> to vector<16x1xf32>
    %34 = tpu.reciprocal %33 {approx = true} : vector<16x1xf32> -> vector<16x1xf32>
    %35 = vector.broadcast %34 : vector<16x1xf32> to vector<16x16xf32>
    %36 = arith.mulf %31, %35 : vector<16x16xf32>
    %cst_15 = arith.constant dense<0.000000e+00> : vector<16x8xf32>
    %37 = tpu.matmul %36, %22, %cst_15 {dimension_numbers = #tpu.dot_dimension_numbers<[1], [0], [0], [1], [0, 0, 1, 1], [], []>} : vector<16x16xf32>, vector<16x8xf32>, vector<16x8xf32> -> vector<16x8xf32>
    %38 = vector.extract_strided_slice %9 {offsets = [0, 8], sizes = [16, 8], strides = [1, 1]} : vector<16x96xf32> to vector<16x8xf32>
    %39 = vector.extract_strided_slice %9 {offsets = [0, 40], sizes = [16, 8], strides = [1, 1]} : vector<16x96xf32> to vector<16x8xf32>
    %40 = vector.extract_strided_slice %9 {offsets = [0, 72], sizes = [16, 8], strides = [1, 1]} : vector<16x96xf32> to vector<16x8xf32>
    %cst_16 = arith.constant dense<0.000000e+00> : vector<16x16xf32>
    %41 = tpu.matmul %38, %39, %cst_16 {dimension_numbers = #tpu.dot_dimension_numbers<[1], [1], [0], [0], [0, 0, 1, 0], [], []>} : vector<16x8xf32>, vector<16x8xf32>, vector<16x16xf32> -> vector<16x16xf32>
    %cst_17 = arith.constant 0.353553385 : f32
    %42 = vector.broadcast %cst_17 : f32 to vector<16x16xf32>
    %43 = arith.mulf %41, %42 : vector<16x16xf32>
    %44 = arith.addf %43, %19 : vector<16x16xf32>
    %cst_18 = arith.constant dense<0xFF800000> : vector<16xf32>
    %45 = vector.multi_reduction <maximumf>, %44, %cst_18 [1] : vector<16x16xf32> to vector<16xf32>
    %46 = vector.shape_cast %45 : vector<16xf32> to vector<16x1xf32>
    %47 = vector.broadcast %46 : vector<16x1xf32> to vector<16x16xf32>
    %48 = arith.subf %44, %47 : vector<16x16xf32>
    %49 = math.exp %48 : vector<16x16xf32>
    %cst_19 = arith.constant dense<0.000000e+00> : vector<16xf32>
    %50 = vector.multi_reduction <add>, %49, %cst_19 [1] : vector<16x16xf32> to vector<16xf32>
    %51 = vector.shape_cast %50 : vector<16xf32> to vector<16x1xf32>
    %52 = tpu.reciprocal %51 {approx = true} : vector<16x1xf32> -> vector<16x1xf32>
    %53 = vector.broadcast %52 : vector<16x1xf32> to vector<16x16xf32>
    %54 = arith.mulf %49, %53 : vector<16x16xf32>
    %cst_20 = arith.constant dense<0.000000e+00> : vector<16x8xf32>
    %55 = tpu.matmul %54, %40, %cst_20 {dimension_numbers = #tpu.dot_dimension_numbers<[1], [0], [0], [1], [0, 0, 1, 1], [], []>} : vector<16x16xf32>, vector<16x8xf32>, vector<16x8xf32> -> vector<16x8xf32>
    %56 = vector.extract_strided_slice %9 {offsets = [0, 16], sizes = [16, 8], strides = [1, 1]} : vector<16x96xf32> to vector<16x8xf32>
    %57 = vector.extract_strided_slice %9 {offsets = [0, 48], sizes = [16, 8], strides = [1, 1]} : vector<16x96xf32> to vector<16x8xf32>
    %58 = vector.extract_strided_slice %9 {offsets = [0, 80], sizes = [16, 8], strides = [1, 1]} : vector<16x96xf32> to vector<16x8xf32>
    %cst_21 = arith.constant dense<0.000000e+00> : vector<16x16xf32>
    %59 = tpu.matmul %56, %57, %cst_21 {dimension_numbers = #tpu.dot_dimension_numbers<[1], [1], [0], [0], [0, 0, 1, 0], [], []>} : vector<16x8xf32>, vector<16x8xf32>, vector<16x16xf32> -> vector<16x16xf32>
    %cst_22 = arith.constant 0.353553385 : f32
    %60 = vector.broadcast %cst_22 : f32 to vector<16x16xf32>
    %61 = arith.mulf %59, %60 : vector<16x16xf32>
    %62 = arith.addf %61, %19 : vector<16x16xf32>
    %cst_23 = arith.constant dense<0xFF800000> : vector<16xf32>
    %63 = vector.multi_reduction <maximumf>, %62, %cst_23 [1] : vector<16x16xf32> to vector<16xf32>
    %64 = vector.shape_cast %63 : vector<16xf32> to vector<16x1xf32>
    %65 = vector.broadcast %64 : vector<16x1xf32> to vector<16x16xf32>
    %66 = arith.subf %62, %65 : vector<16x16xf32>
    %67 = math.exp %66 : vector<16x16xf32>
    %cst_24 = arith.constant dense<0.000000e+00> : vector<16xf32>
    %68 = vector.multi_reduction <add>, %67, %cst_24 [1] : vector<16x16xf32> to vector<16xf32>
    %69 = vector.shape_cast %68 : vector<16xf32> to vector<16x1xf32>
    %70 = tpu.reciprocal %69 {approx = true} : vector<16x1xf32> -> vector<16x1xf32>
    %71 = vector.broadcast %70 : vector<16x1xf32> to vector<16x16xf32>
    %72 = arith.mulf %67, %71 : vector<16x16xf32>
    %cst_25 = arith.constant dense<0.000000e+00> : vector<16x8xf32>
    %73 = tpu.matmul %72, %58, %cst_25 {dimension_numbers = #tpu.dot_dimension_numbers<[1], [0], [0], [1], [0, 0, 1, 1], [], []>} : vector<16x16xf32>, vector<16x8xf32>, vector<16x8xf32> -> vector<16x8xf32>
    %74 = vector.extract_strided_slice %9 {offsets = [0, 24], sizes = [16, 8], strides = [1, 1]} : vector<16x96xf32> to vector<16x8xf32>
    %75 = vector.extract_strided_slice %9 {offsets = [0, 56], sizes = [16, 8], strides = [1, 1]} : vector<16x96xf32> to vector<16x8xf32>
    %76 = vector.extract_strided_slice %9 {offsets = [0, 88], sizes = [16, 8], strides = [1, 1]} : vector<16x96xf32> to vector<16x8xf32>
    %cst_26 = arith.constant dense<0.000000e+00> : vector<16x16xf32>
    %77 = tpu.matmul %74, %75, %cst_26 {dimension_numbers = #tpu.dot_dimension_numbers<[1], [1], [0], [0], [0, 0, 1, 0], [], []>} : vector<16x8xf32>, vector<16x8xf32>, vector<16x16xf32> -> vector<16x16xf32>
    %cst_27 = arith.constant 0.353553385 : f32
    %78 = vector.broadcast %cst_27 : f32 to vector<16x16xf32>
    %79 = arith.mulf %77, %78 : vector<16x16xf32>
    %80 = arith.addf %79, %19 : vector<16x16xf32>
    %cst_28 = arith.constant dense<0xFF800000> : vector<16xf32>
    %81 = vector.multi_reduction <maximumf>, %80, %cst_28 [1] : vector<16x16xf32> to vector<16xf32>
    %82 = vector.shape_cast %81 : vector<16xf32> to vector<16x1xf32>
    %83 = vector.broadcast %82 : vector<16x1xf32> to vector<16x16xf32>
    %84 = arith.subf %80, %83 : vector<16x16xf32>
    %85 = math.exp %84 : vector<16x16xf32>
    %cst_29 = arith.constant dense<0.000000e+00> : vector<16xf32>
    %86 = vector.multi_reduction <add>, %85, %cst_29 [1] : vector<16x16xf32> to vector<16xf32>
    %87 = vector.shape_cast %86 : vector<16xf32> to vector<16x1xf32>
    %88 = tpu.reciprocal %87 {approx = true} : vector<16x1xf32> -> vector<16x1xf32>
    %89 = vector.broadcast %88 : vector<16x1xf32> to vector<16x16xf32>
    %90 = arith.mulf %85, %89 : vector<16x16xf32>
    %cst_30 = arith.constant dense<0.000000e+00> : vector<16x8xf32>
    %91 = tpu.matmul %90, %76, %cst_30 {dimension_numbers = #tpu.dot_dimension_numbers<[1], [0], [0], [1], [0, 0, 1, 1], [], []>} : vector<16x16xf32>, vector<16x8xf32>, vector<16x8xf32> -> vector<16x8xf32>
    %92 = tpu.concatenate %37, %55, %73, %91 in 1 : vector<16x8xf32>, vector<16x8xf32>, vector<16x8xf32>, vector<16x8xf32> -> vector<16x32xf32>
    %c32 = arith.constant 32 : index
    %c0_31 = arith.constant 0 : index
    %93 = vector.load %arg3[%c32, %c0_31] : memref<160x128xf32, #tpu.memory_space<vmem>>, vector<32x32xf32>
    %cst_32 = arith.constant dense<0.000000e+00> : vector<16x32xf32>
    %94 = tpu.matmul %92, %93, %cst_32 {dimension_numbers = #tpu.dot_dimension_numbers<[1], [0], [0], [1], [0, 0, 1, 1], [], []>} : vector<16x32xf32>, vector<32x32xf32>, vector<16x32xf32> -> vector<16x32xf32>
    %c1 = arith.constant 1 : index
    %c0_33 = arith.constant 0 : index
    %95 = vector.load %arg4[%c1, %c0_33] : memref<16x128xf32, #tpu.memory_space<vmem>>, vector<1x32xf32>
    %96 = vector.broadcast %95 : vector<1x32xf32> to vector<16x32xf32>
    %97 = arith.addf %94, %96 : vector<16x32xf32>
    %98 = arith.addf %4, %97 : vector<16x32xf32>
    %c2 = arith.constant 2 : index
    %c0_34 = arith.constant 0 : index
    %99 = vector.load %arg4[%c2, %c0_34] : memref<16x128xf32, #tpu.memory_space<vmem>>, vector<1x32xf32>
    %c3 = arith.constant 3 : index
    %c0_35 = arith.constant 0 : index
    %100 = vector.load %arg4[%c3, %c0_35] : memref<16x128xf32, #tpu.memory_space<vmem>>, vector<1x32xf32>
    %cst_36 = arith.constant dense<0.000000e+00> : vector<16xf32>
    %101 = vector.multi_reduction <add>, %98, %cst_36 [1] : vector<16x32xf32> to vector<16xf32>
    %102 = vector.shape_cast %101 : vector<16xf32> to vector<16x1xf32>
    %cst_37 = arith.constant 3.200000e+01 : f32
    %103 = vector.broadcast %cst_37 : f32 to vector<16x1xf32>
    %104 = arith.divf %102, %103 : vector<16x1xf32>
    %105 = vector.broadcast %104 : vector<16x1xf32> to vector<16x32xf32>
    %106 = arith.subf %98, %105 : vector<16x32xf32>
    %107 = arith.mulf %106, %106 : vector<16x32xf32>
    %cst_38 = arith.constant dense<0.000000e+00> : vector<16xf32>
    %108 = vector.multi_reduction <add>, %107, %cst_38 [1] : vector<16x32xf32> to vector<16xf32>
    %109 = vector.shape_cast %108 : vector<16xf32> to vector<16x1xf32>
    %cst_39 = arith.constant 3.200000e+01 : f32
    %110 = vector.broadcast %cst_39 : f32 to vector<16x1xf32>
    %111 = arith.divf %109, %110 : vector<16x1xf32>
    %112 = vector.broadcast %104 : vector<16x1xf32> to vector<16x32xf32>
    %113 = arith.subf %98, %112 : vector<16x32xf32>
    %cst_40 = arith.constant 9.99999974E-6 : f32
    %114 = vector.broadcast %cst_40 : f32 to vector<16x1xf32>
    %115 = arith.addf %111, %114 : vector<16x1xf32>
    %116 = math.rsqrt %115 : vector<16x1xf32>
    %117 = vector.broadcast %116 : vector<16x1xf32> to vector<16x32xf32>
    %118 = arith.mulf %113, %117 : vector<16x32xf32>
    %119 = vector.broadcast %99 : vector<1x32xf32> to vector<16x32xf32>
    %120 = arith.mulf %118, %119 : vector<16x32xf32>
    %121 = vector.broadcast %100 : vector<1x32xf32> to vector<16x32xf32>
    %122 = arith.addf %120, %121 : vector<16x32xf32>
    %c64 = arith.constant 64 : index
    %c0_41 = arith.constant 0 : index
    %123 = vector.load %arg3[%c64, %c0_41] : memref<160x128xf32, #tpu.memory_space<vmem>>, vector<32x128xf32>
    %cst_42 = arith.constant dense<0.000000e+00> : vector<16x128xf32>
    %124 = tpu.matmul %122, %123, %cst_42 {dimension_numbers = #tpu.dot_dimension_numbers<[1], [0], [0], [1], [0, 0, 1, 1], [], []>} : vector<16x32xf32>, vector<32x128xf32>, vector<16x128xf32> -> vector<16x128xf32>
    %c4 = arith.constant 4 : index
    %c0_43 = arith.constant 0 : index
    %125 = vector.load %arg4[%c4, %c0_43] : memref<16x128xf32, #tpu.memory_space<vmem>>, vector<1x128xf32>
    %126 = vector.broadcast %125 : vector<1x128xf32> to vector<16x128xf32>
    %127 = arith.addf %124, %126 : vector<16x128xf32>
    %cst_44 = arith.constant 0.000000e+00 : f32
    %128 = vector.broadcast %cst_44 : f32 to vector<16x128xf32>
    %129 = arith.maximumf %127, %128 : vector<16x128xf32>
    %c96 = arith.constant 96 : index
    %c0_45 = arith.constant 0 : index
    %130 = vector.load %arg3[%c96, %c0_45] : memref<160x128xf32, #tpu.memory_space<vmem>>, vector<32x128xf32>
    %cst_46 = arith.constant dense<0.000000e+00> : vector<16x32xf32>
    %131 = tpu.matmul %129, %130, %cst_46 {dimension_numbers = #tpu.dot_dimension_numbers<[1], [1], [0], [0], [0, 0, 1, 0], [], []>} : vector<16x128xf32>, vector<32x128xf32>, vector<16x32xf32> -> vector<16x32xf32>
    %c5 = arith.constant 5 : index
    %c0_47 = arith.constant 0 : index
    %132 = vector.load %arg4[%c5, %c0_47] : memref<16x128xf32, #tpu.memory_space<vmem>>, vector<1x32xf32>
    %133 = vector.broadcast %132 : vector<1x32xf32> to vector<16x32xf32>
    %134 = arith.addf %131, %133 : vector<16x32xf32>
    %135 = arith.addf %122, %134 : vector<16x32xf32>
    %c6 = arith.constant 6 : index
    %c0_48 = arith.constant 0 : index
    %136 = vector.load %arg4[%c6, %c0_48] : memref<16x128xf32, #tpu.memory_space<vmem>>, vector<1x32xf32>
    %c7 = arith.constant 7 : index
    %c0_49 = arith.constant 0 : index
    %137 = vector.load %arg4[%c7, %c0_49] : memref<16x128xf32, #tpu.memory_space<vmem>>, vector<1x32xf32>
    %cst_50 = arith.constant dense<0.000000e+00> : vector<16xf32>
    %138 = vector.multi_reduction <add>, %135, %cst_50 [1] : vector<16x32xf32> to vector<16xf32>
    %139 = vector.shape_cast %138 : vector<16xf32> to vector<16x1xf32>
    %cst_51 = arith.constant 3.200000e+01 : f32
    %140 = vector.broadcast %cst_51 : f32 to vector<16x1xf32>
    %141 = arith.divf %139, %140 : vector<16x1xf32>
    %142 = vector.broadcast %141 : vector<16x1xf32> to vector<16x32xf32>
    %143 = arith.subf %135, %142 : vector<16x32xf32>
    %144 = arith.mulf %143, %143 : vector<16x32xf32>
    %cst_52 = arith.constant dense<0.000000e+00> : vector<16xf32>
    %145 = vector.multi_reduction <add>, %144, %cst_52 [1] : vector<16x32xf32> to vector<16xf32>
    %146 = vector.shape_cast %145 : vector<16xf32> to vector<16x1xf32>
    %cst_53 = arith.constant 3.200000e+01 : f32
    %147 = vector.broadcast %cst_53 : f32 to vector<16x1xf32>
    %148 = arith.divf %146, %147 : vector<16x1xf32>
    %149 = vector.broadcast %141 : vector<16x1xf32> to vector<16x32xf32>
    %150 = arith.subf %135, %149 : vector<16x32xf32>
    %cst_54 = arith.constant 9.99999974E-6 : f32
    %151 = vector.broadcast %cst_54 : f32 to vector<16x1xf32>
    %152 = arith.addf %148, %151 : vector<16x1xf32>
    %153 = math.rsqrt %152 : vector<16x1xf32>
    %154 = vector.broadcast %153 : vector<16x1xf32> to vector<16x32xf32>
    %155 = arith.mulf %150, %154 : vector<16x32xf32>
    %156 = vector.broadcast %136 : vector<1x32xf32> to vector<16x32xf32>
    %157 = arith.mulf %155, %156 : vector<16x32xf32>
    %158 = vector.broadcast %137 : vector<1x32xf32> to vector<16x32xf32>
    %159 = arith.addf %157, %158 : vector<16x32xf32>
    %c128 = arith.constant 128 : index
    %c0_55 = arith.constant 0 : index
    %160 = vector.load %arg3[%c128, %c0_55] : memref<160x128xf32, #tpu.memory_space<vmem>>, vector<32x1xf32>
    %cst_56 = arith.constant dense<0.000000e+00> : vector<16x1xf32>
    %161 = tpu.matmul %159, %160, %cst_56 {dimension_numbers = #tpu.dot_dimension_numbers<[1], [0], [0], [1], [0, 0, 1, 1], [], []>} : vector<16x32xf32>, vector<32x1xf32>, vector<16x1xf32> -> vector<16x1xf32>
    %c8 = arith.constant 8 : index
    %c0_57 = arith.constant 0 : index
    %162 = vector.load %arg4[%c8, %c0_57] : memref<16x128xf32, #tpu.memory_space<vmem>>, vector<1x1xf32>
    %163 = vector.broadcast %162 : vector<1x1xf32> to vector<16x1xf32>
    %164 = arith.addf %161, %163 : vector<16x1xf32>
    %c0_58 = arith.constant 0 : index
    %c0_59 = arith.constant 0 : index
    %165 = vector.load %arg5[%c0_58, %c0_59] : memref<16x1xf32, #tpu.memory_space<vmem>>, vector<16x1xf32>
    tpu.vector_store %arg5[%c0_58, %c0_59], %164 {strides = array<i32>} : memref<16x1xf32, #tpu.memory_space<vmem>>, vector<16x1xf32>,
    return
  }
  func.func @transform_0(%arg0: i32) -> (i32, i32) {
    %c0_i32 = arith.constant 0 : i32
    %c0_i32_0 = arith.constant 0 : i32
    %c0_i32_1 = arith.constant 0 : i32
    return %c0_i32, %c0_i32_0 : i32, i32
  }
  func.func @transform_1(%arg0: i32) -> (i32, i32) {
    %c0_i32 = arith.constant 0 : i32
    %c0_i32_0 = arith.constant 0 : i32
    %c0_i32_1 = arith.constant 0 : i32
    return %c0_i32, %c0_i32_0 : i32, i32
  }
  func.func @transform_2(%arg0: i32) -> (i32, i32) {
    %c0_i32 = arith.constant 0 : i32
    %c0_i32_0 = arith.constant 0 : i32
    %c0_i32_1 = arith.constant 0 : i32
    return %c0_i32, %c0_i32_0 : i32, i32
  }
  func.func @transform_3(%arg0: i32) -> (i32, i32) {
    %c0_i32 = arith.constant 0 : i32
    %c0_i32_0 = arith.constant 0 : i32
    %c0_i32_1 = arith.constant 0 : i32
    return %c0_i32, %c0_i32_0 : i32, i32
  }
  func.func @transform_4(%arg0: i32) -> (i32, i32) {
    %c0_i32 = arith.constant 0 : i32
    %c0_i32_0 = arith.constant 0 : i32
    %c0_i32_1 = arith.constant 0 : i32
    return %c0_i32, %c0_i32_0 : i32, i32
  }
}

</mosaic_0001>

<llo_original>
// kernel: tpu_custom_call.1
$region0: #{tpu_custom_call.1}
  #allocation0 [shape = 'u32[]', space=smem, size = 0x4, offset = 0x4, fixed_abs, tag = 'smem constant byte address 0x4 - core index']
  #allocation1 [shape = 'u32[144,128]{1,0:T(1,128)}', space=vmem, size = 0x12000, scoped, tag = 'internal scratch']
  %s0 = inlined_call_operand.hbm [shape: f32[16,32], index: 0, kind: input, shape index: {}]
  %s1 = inlined_call_operand.hbm [shape: f32[16,32], index: 1, kind: input, shape index: {}]
  %s2 = inlined_call_operand.hbm [shape: f32[160,128], index: 2, kind: input, shape index: {}]
  %s3 = inlined_call_operand.hbm [shape: f32[16,128], index: 3, kind: input, shape index: {}]
  %s4 = inlined_call_operand.vmem [shape: f32[16,1], index: 4, kind: output, shape index: {}]
  %s5 = sld [smem:[#allocation0]]
  $region42: #{tpu_custom_call.1} parent=0
    _
  %s7 = ssub.s32 1, %s5
  %s8 = scalar_select 0, %s7, %s5
  $region1: #{tpu_custom_call.1} parent=0
    #allocation2 [shape = 'u8[8192]{0}', space=vmem, size = 0x2000, scoped, tag = 'input window, operand 0, single buffered']
    #allocation3 [shape = 's32[1]{0}', space=sflag, size = 0x4, scoped, tag = 'scoped memory for tpu_custom_call.1']
    #allocation4 [shape = 'u8[8192]{0}', space=vmem, size = 0x2000, scoped, tag = 'input window, operand 1, single buffered']
    #allocation5 [shape = 's32[1]{0}', space=sflag, size = 0x4, scoped, tag = 'scoped memory for tpu_custom_call.1']
    #allocation6 [shape = 'u8[81920]{0}', space=vmem, size = 0x14000, scoped, tag = 'input window, operand 2, single buffered']
    #allocation7 [shape = 'u8[8192]{0}', space=vmem, size = 0x2000, scoped, tag = 'input window, operand 3, single buffered']
    #allocation8 [shape = 's32[1]{0}', space=sflag, size = 0x4, scoped, tag = 'scoped memory for tpu_custom_call.1']
    %9 = vsyncpa [#allocation3], 0
    %10 = vsyncpa [#allocation5], 0
    %11 = vsyncpa [#allocation8], 0
    // Predicated region
    $region2: #{tpu_custom_call.1} parent=1 // pred_check
      _
    $region3: #{tpu_custom_call.1} parent=1 // pred_check_branch
      %13 = sbr.rel (0) target = $region5
    $region4: #{tpu_custom_call.1} parent=1 // pred_region
      %s15 = ssub.s32 256, 256
      %16 = vsyncadd [#allocation3], %s15
      %s17 = sshll.u32 [#allocation2], 4
      %s18 = int_to_ptr.vmem [resolvable:$true] %s17
      %23 = dma.hbm_to_vmem [thread:$0]  %s0, 256, %s18, [#allocation3], 128, 128, 8
    $region5: #{tpu_custom_call.1} parent=1 // pred_fallthru
      _
    // Predicated region
    $region6: #{tpu_custom_call.1} parent=1 // pred_check
      _
    $region7: #{tpu_custom_call.1} parent=1 // pred_check_branch
      %25 = sbr.rel (0) target = $region9
    $region8: #{tpu_custom_call.1} parent=1 // pred_region
      %s27 = ssub.s32 256, 256
      %28 = vsyncadd [#allocation5], %s27
      %s29 = sshll.u32 [#allocation4], 4
      %s30 = int_to_ptr.vmem [resolvable:$true] %s29
      %35 = dma.hbm_to_vmem [thread:$0]  %s1, 256, %s30, [#allocation5], 128, 128, 8
    $region9: #{tpu_custom_call.1} parent=1 // pred_fallthru
      _
    // Predicated region
    $region10: #{tpu_custom_call.1} parent=1 // pred_check
      _
    $region11: #{tpu_custom_call.1} parent=1 // pred_check_branch
      %37 = sbr.rel (0) target = $region13
    $region12: #{tpu_custom_call.1} parent=1 // pred_region
      %s39 = ssub.s32 2560, 2560
      %40 = vsyncadd [#allocation5], %s39
      %s41 = sshll.u32 [#allocation6], 4
      %s42 = int_to_ptr.vmem [resolvable:$true] %s41
      %47 = dma.hbm_to_vmem [thread:$0]  %s2, 2560, %s42, [#allocation5], 128, 128, 8
    $region13: #{tpu_custom_call.1} parent=1 // pred_fallthru
      _
    // Predicated region
    $region14: #{tpu_custom_call.1} parent=1 // pred_check
      _
    $region15: #{tpu_custom_call.1} parent=1 // pred_check_branch
      %49 = sbr.rel (0) target = $region17
    $region16: #{tpu_custom_call.1} parent=1 // pred_region
      %s51 = ssub.s32 256, 256
      %52 = vsyncadd [#allocation8], %s51
      %s53 = sshll.u32 [#allocation7], 4
      %s54 = int_to_ptr.vmem [resolvable:$true] %s53
      %59 = dma.hbm_to_vmem [thread:$0]  %s3, 256, %s54, [#allocation8], 128, 128, 8
    $region17: #{tpu_custom_call.1} parent=1 // pred_fallthru
      _
    // Predicated region
    $region18: #{tpu_custom_call.1} parent=1 // pred_check
      _
    $region19: #{tpu_custom_call.1} parent=1 // pred_check_branch
      %61 = sbr.rel (0) target = $region21
    $region20: #{tpu_custom_call.1} parent=1 // pred_region
      %62 = dma.done [#allocation3], 256
    $region21: #{tpu_custom_call.1} parent=1 // pred_fallthru
      _
    // Predicated region
    $region22: #{tpu_custom_call.1} parent=1 // pred_check
      _
    $region23: #{tpu_custom_call.1} parent=1 // pred_check_branch
      %64 = sbr.rel (0) target = $region25
    $region24: #{tpu_custom_call.1} parent=1 // pred_region
      %65 = dma.done [#allocation5], 256
    $region25: #{tpu_custom_call.1} parent=1 // pred_fallthru
      _
    // Predicated region
    $region26: #{tpu_custom_call.1} parent=1 // pred_check
      _
    $region27: #{tpu_custom_call.1} parent=1 // pred_check_branch
      %67 = sbr.rel (0) target = $region29
    $region28: #{tpu_custom_call.1} parent=1 // pred_region
      %68 = dma.done [#allocation5], 2560
    $region29: #{tpu_custom_call.1} parent=1 // pred_fallthru
      _
    // Predicated region
    $region30: #{tpu_custom_call.1} parent=1 // pred_check
      _
    $region31: #{tpu_custom_call.1} parent=1 // pred_check_branch
      %70 = sbr.rel (0) target = $region33
    $region32: #{tpu_custom_call.1} parent=1 // pred_region
      %71 = dma.done [#allocation8], 256
    $region33: #{tpu_custom_call.1} parent=1 // pred_fallthru
      _
    %v72 = vld [vmem:[#allocation2] sm:$0xff]
    %v73 = vld [vmem:[#allocation2 + $0x8] sm:$0xff]
    %v74 = vmul.f32 %v72, 5.656854
    %v75 = vmul.f32 %v73, 5.656854
    %v76 = vld [vmem:[#allocation4] sm:$0xff]
    %v77 = vld [vmem:[#allocation4 + $0x8] sm:$0xff]
    %v78 = vadd.f32 %v74, %v76
    %v79 = vadd.f32 %v75, %v77
    %v80 = vld [vmem:[#allocation6] sm:$0xff]
    %v81 = vld [vmem:[#allocation6 + $0x8] sm:$0xff]
    %v82 = vld [vmem:[#allocation6 + $0x10] sm:$0xff]
    %v83 = vld [vmem:[#allocation6 + $0x18] sm:$0xff]
    %v84 = vld [vmem:[#allocation7] sm:$0x1]
    %v85 = vlaneseq
    %v86 = vshrl.u32 %v85, 7
    %v87 = vsub.s32 0, %v86
    %v88 = vrot.slane %v84, %v87
    %vm89 = vcmask 261120
    %v91 = vsel %vm89, %v78, 0
    %v94 = vsel %vm89, %v79, 0
    %96 = vmatprep.subr.mxu0 0.0
    %97 = vmatpush1.msra.mxu0 %v80
    %98 = vmatprep.subr.mxu0 0.0
    %99 = vmatpush1.msra.mxu0 %v81
    %100 = vmatprep.subr.mxu0 0.0
    %101 = vmatpush1.msra.mxu0 %v82
    %102 = vmatprep.subr.mxu0 0.0
    %103 = vmatpush1.msra.mxu0 %v83
    %104 = vmatprep.subr.mxu0 0.0
    %105 = vmatpush1.msra.mxu0 0.0
    %106 = vmatprep.subr.mxu0 0.0
    %107 = vmatpush1.msra.mxu0 0.0
    %108 = vmatprep.subr.mxu0 0.0
    %109 = vmatpush1.msra.mxu0 0.0
    %110 = vmatprep.subr.mxu0 0.0
    %111 = vmatpush1.msra.mxu0 0.0
    %112 = vmatprep.subr.mxu0 0.0
    %113 = vmatpush1.msra.mxu0 0.0
    %114 = vmatprep.subr.mxu0 0.0
    %115 = vmatpush1.msra.mxu0 0.0
    %116 = vmatprep.subr.mxu0 0.0
    %117 = vmatpush1.msra.mxu0 0.0
    %118 = vmatprep.subr.mxu0 0.0
    %119 = vmatpush1.msra.mxu0 0.0
    %120 = vmatprep.subr.mxu0 0.0
    %121 = vmatpush1.msra.mxu0 0.0
    %122 = vmatprep.subr.mxu0 0.0
    %123 = vmatpush1.msra.mxu0 0.0
    %124 = vmatprep.subr.mxu0 0.0
    %125 = vmatpush1.msra.mxu0 0.0
    %126 = vmatprep.subr.mxu0 0.0
    %127 = vmatpush1.msra.mxu0 0.0
    %128 = vmatprep.subr.mxu0 0.0
    %129 = vmatpush1.msra.mxu0 0.0
    %130 = vmatprep.subr.mxu0 0.0
    %131 = vmatpush1.msra.mxu0 0.0
    %132 = vmatprep.subr.mxu0 0.0
    %133 = vmatpush1.msra.mxu0 0.0
    %134 = vmatprep.subr.mxu0 0.0
    %135 = vmatpush1.msra.mxu0 0.0
    %136 = vmatprep.subr.mxu0 0.0
    %137 = vmatpush1.msra.mxu0 0.0
    %138 = vmatprep.subr.mxu0 0.0
    %139 = vmatpush1.msra.mxu0 0.0
    %140 = vmatprep.subr.mxu0 0.0
    %141 = vmatpush1.msra.mxu0 0.0
    %142 = vmatprep.subr.mxu0 0.0
    %143 = vmatpush1.msra.mxu0 0.0
    %144 = vmatprep.subr.mxu0 0.0
    %145 = vmatpush1.msra.mxu0 0.0
    %146 = vmatprep.subr.mxu0 0.0
    %147 = vmatpush1.msra.mxu0 0.0
    %148 = vmatprep.subr.mxu0 0.0
    %149 = vmatpush1.msra.mxu0 0.0
    %150 = vmatprep.subr.mxu0 0.0
    %151 = vmatpush1.msra.mxu0 0.0
    %152 = vmatprep.subr.mxu0 0.0
    %153 = vmatpush1.msra.mxu0 0.0
    %154 = vmatprep.subr.mxu0 0.0
    %155 = vmatpush1.msra.mxu0 0.0
    %156 = vmatprep.subr.mxu0 0.0
    %157 = vmatpush1.msra.mxu0 0.0
    %158 = vmatprep.subr.mxu0 0.0
    %159 = vmatpush1.msra.mxu0 0.0
    %160 = vmatprep.mubr.f32.mxu0 0.0
    %161 = vmatmul.mubr.f32.gmra.mrb[0].mxu0 %v91
    %v162 = vpop.f32.mrb[0].mxu0
    %v163 = vadd.f32 %v88, %v162
    %v164 = vpop.f32.mrb[0].mxu0
    %165 = vmatprep.mubr.f32.mxu0 0.0
    %166 = vmatmul.mubr.f32.gmra.mrb[0].mxu0 %v94
    %v167 = vpop.f32.mrb[0].mxu0
    %v168 = vadd.f32 %v88, %v167
    %v169 = vpop.f32.mrb[0].mxu0
    %170 = vdwg.mxu0
    %v171 = vlaneseq
    %v172 = vshrl.u32 %v171, 7
    %v173 = vadd.s32 %v172, 8
    %v174 = vand.u32 %v172, 4294967288
    %v175 = vand.u32 %v173, 4294967288
    %v176 = vlaneseq
    %v177 = vand.u32 %v176, 127
    %v178 = vand.u32 %v177, 4294967288
    %vm179 = vcmp.eq.s32.totalorder %v174, %v178
    %vm180 = vcmp.eq.s32.totalorder %v175, %v178
    %v181 = vsel %vm179, 0.0, -1e+30
    %v182 = vsel %vm180, 0.0, -1e+30
    %185 = vrot.lane.b32.xlu0 %v163, 96
    %v186 = vpop.permute.xlu0 %185
    %187 = vrot.lane.b32.xlu0 %v168, 96
    %v188 = vpop.permute.xlu0 %187
    %vm189 = vcmask 64512
    %v190 = vsel %vm189, %v163, 0
    %v192 = vsel %vm189, %v168, 0
    %v194 = vsel %vm189, %v186, 0
    %v196 = vsel %vm189, %v188, 0
    %198 = vmatprep.subr.mxu0 0.0
    %199 = vmatpush1.xpose.msra.mxu0 %v194
    %200 = vmatprep.subr.mxu0 0.0
    %201 = vmatpush1.xpose.msra.mxu0 %v196
    %202 = vmatprep.subr.mxu0 0.0
    %203 = vmatpush1.xpose.msra.mxu0 0.0
    %204 = vmatprep.subr.mxu0 0.0
    %205 = vmatpush1.xpose.msra.mxu0 0.0
    %206 = vmatprep.subr.mxu0 0.0
    %207 = vmatpush1.xpose.msra.mxu0 0.0
    %208 = vmatprep.subr.mxu0 0.0
    %209 = vmatpush1.xpose.msra.mxu0 0.0
    %210 = vmatprep.subr.mxu0 0.0
    %211 = vmatpush1.xpose.msra.mxu0 0.0
    %212 = vmatprep.subr.mxu0 0.0
    %213 = vmatpush1.xpose.msra.mxu0 0.0
    %214 = vmatprep.subr.mxu0 0.0
    %215 = vmatpush1.xpose.msra.mxu0 0.0
    %216 = vmatprep.subr.mxu0 0.0
    %217 = vmatpush1.xpose.msra.mxu0 0.0
    %218 = vmatprep.subr.mxu0 0.0
    %219 = vmatpush1.xpose.msra.mxu0 0.0
    %220 = vmatprep.subr.mxu0 0.0
    %221 = vmatpush1.xpose.msra.mxu0 0.0
    %222 = vmatprep.subr.mxu0 0.0
    %223 = vmatpush1.xpose.msra.mxu0 0.0
    %224 = vmatprep.subr.mxu0 0.0
    %225 = vmatpush1.xpose.msra.mxu0 0.0
    %226 = vmatprep.subr.mxu0 0.0
    %227 = vmatpush1.xpose.msra.mxu0 0.0
    %228 = vmatprep.subr.mxu0 0.0
    %229 = vmatpush1.xpose.msra.mxu0 0.0
    %230 = vmatprep.subr.mxu0 0.0
    %231 = vmatpush1.xpose.msra.mxu0 0.0
    %232 = vmatprep.subr.mxu0 0.0
    %233 = vmatpush1.xpose.msra.mxu0 0.0
    %234 = vmatprep.subr.mxu0 0.0
    %235 = vmatpush1.xpose.msra.mxu0 0.0
    %236 = vmatprep.subr.mxu0 0.0
    %237 = vmatpush1.xpose.msra.mxu0 0.0
    %238 = vmatprep.subr.mxu0 0.0
    %239 = vmatpush1.xpose.msra.mxu0 0.0
    %240 = vmatprep.subr.mxu0 0.0
    %241 = vmatpush1.xpose.msra.mxu0 0.0
    %242 = vmatprep.subr.mxu0 0.0
    %243 = vmatpush1.xpose.msra.mxu0 0.0
    %244 = vmatprep.subr.mxu0 0.0
    %245 = vmatpush1.xpose.msra.mxu0 0.0
    %246 = vmatprep.subr.mxu0 0.0
    %247 = vmatpush1.xpose.msra.mxu0 0.0
    %248 = vmatprep.subr.mxu0 0.0
    %249 = vmatpush1.xpose.msra.mxu0 0.0
    %250 = vmatprep.subr.mxu0 0.0
    %251 = vmatpush1.xpose.msra.mxu0 0.0
    %252 = vmatprep.subr.mxu0 0.0
    %253 = vmatpush1.xpose.msra.mxu0 0.0
    %254 = vmatprep.subr.mxu0 0.0
    %255 = vmatpush1.xpose.msra.mxu0 0.0
    %256 = vmatprep.subr.mxu0 0.0
    %257 = vmatpush1.xpose.msra.mxu0 0.0
    %258 = vmatprep.subr.mxu0 0.0
    %259 = vmatpush1.xpose.msra.mxu0 0.0
    %260 = vmatprep.subr.mxu0 0.0
    %261 = vmatpush1.xpose.msra.mxu0 0.0
    %262 = vmatprep.mubr.f32.mxu0 0.0
    %263 = vmatmul.mubr.f32.gmra.mrb[0].mxu0 %v190
    %v264 = vpop.f32.mrb[0].mxu0
    %v265 = vadd.f32 0.0, %v264
    %v266 = vpop.f32.mrb[0].mxu0
    %267 = vmatprep.mubr.f32.mxu0 0.0
    %268 = vmatmul.mubr.f32.gmra.mrb[0].mxu0 %v192
    %v269 = vpop.f32.mrb[0].mxu0
    %v270 = vadd.f32 0.0, %v269
    %v271 = vpop.f32.mrb[0].mxu0
    %272 = vdwg.mxu0
    %v273 = vmul.f32 %v265, 0.35355338
    %v274 = vmul.f32 %v270, 0.35355338
    %v275 = vadd.f32 %v273, %v181
    %v276 = vadd.f32 %v274, %v182
    %vm277 = vcmask 130048
    %v278 = vsel %vm277, %v275, -inf
    %279 = vmax.xlane.f32.xlu0 %v278
    %v280 = vpop.xlane.xlu0 %279
    %v281 = vsel %vm277, %v276, -inf
    %282 = vmax.xlane.f32.xlu0 %v281
    %v283 = vpop.xlane.xlu0 %282
    %v284 = vsub.f32 %v275, %v280
    %v285 = vsub.f32 %v276, %v283
    %v286 = vmul.f32 %v284, 1.442695
    %v287 = vpow.pop %v286
    %v288 = vmul.f32 %v285, 1.442695
    %v289 = vpow.pop %v288
    %v290 = vsel %vm277, %v287, 0.0
    %291 = vadd.xlane.f32.xlu0 %v290
    %v292 = vpop.xlane.xlu0 %291
    %v293 = vsel %vm277, %v289, 0.0
    %294 = vadd.xlane.f32.xlu0 %v293
    %v295 = vpop.xlane.xlu0 %294
    %v296 = vrcp.pop %v292
    %v297 = vrcp.pop %v295
    %v298 = vmul.f32 %v287, %v296
    %v299 = vmul.f32 %v289, %v297
    %300 = vrot.lane.b32.xlu0 %v163, 64
    %v301 = vpop.permute.xlu0 %300
    %302 = vrot.lane.b32.xlu0 %v168, 64
    %v303 = vpop.permute.xlu0 %302
    %v307 = vsel %vm277, %v298, 0
    %v310 = vsel %vm277, %v299, 0
    %312 = vmatprep.subr.mxu0 0.0
    %313 = vmatpush1.msra.mxu0 %v301
    %314 = vmatprep.subr.mxu0 0.0
    %315 = vmatpush1.msra.mxu0 %v303
    %316 = vmatprep.subr.mxu0 0.0
    %317 = vmatpush1.msra.mxu0 0.0
    %318 = vmatprep.subr.mxu0 0.0
    %319 = vmatpush1.msra.mxu0 0.0
    %320 = vmatprep.subr.mxu0 0.0
    %321 = vmatpush1.msra.mxu0 0.0
    %322 = vmatprep.subr.mxu0 0.0
    %323 = vmatpush1.msra.mxu0 0.0
    %324 = vmatprep.subr.mxu0 0.0
    %325 = vmatpush1.msra.mxu0 0.0
    %326 = vmatprep.subr.mxu0 0.0
    %327 = vmatpush1.msra.mxu0 0.0
    %328 = vmatprep.subr.mxu0 0.0
    %329 = vmatpush1.msra.mxu0 0.0
    %330 = vmatprep.subr.mxu0 0.0
    %331 = vmatpush1.msra.mxu0 0.0
    %332 = vmatprep.subr.mxu0 0.0
    %333 = vmatpush1.msra.mxu0 0.0
    %334 = vmatprep.subr.mxu0 0.0
    %335 = vmatpush1.msra.mxu0 0.0
    %336 = vmatprep.subr.mxu0 0.0
    %337 = vmatpush1.msra.mxu0 0.0
    %338 = vmatprep.subr.mxu0 0.0
    %339 = vmatpush1.msra.mxu0 0.0
    %340 = vmatprep.subr.mxu0 0.0
    %341 = vmatpush1.msra.mxu0 0.0
    %342 = vmatprep.subr.mxu0 0.0
    %343 = vmatpush1.msra.mxu0 0.0
    %344 = vmatprep.subr.mxu0 0.0
    %345 = vmatpush1.msra.mxu0 0.0
    %346 = vmatprep.subr.mxu0 0.0
    %347 = vmatpush1.msra.mxu0 0.0
    %348 = vmatprep.subr.mxu0 0.0
    %349 = vmatpush1.msra.mxu0 0.0
    %350 = vmatprep.subr.mxu0 0.0
    %351 = vmatpush1.msra.mxu0 0.0
    %352 = vmatprep.subr.mxu0 0.0
    %353 = vmatpush1.msra.mxu0 0.0
    %354 = vmatprep.subr.mxu0 0.0
    %355 = vmatpush1.msra.mxu0 0.0
    %356 = vmatprep.subr.mxu0 0.0
    %357 = vmatpush1.msra.mxu0 0.0
    %358 = vmatprep.subr.mxu0 0.0
    %359 = vmatpush1.msra.mxu0 0.0
    %360 = vmatprep.subr.mxu0 0.0
    %361 = vmatpush1.msra.mxu0 0.0
    %362 = vmatprep.subr.mxu0 0.0
    %363 = vmatpush1.msra.mxu0 0.0
    %364 = vmatprep.subr.mxu0 0.0
    %365 = vmatpush1.msra.mxu0 0.0
    %366 = vmatprep.subr.mxu0 0.0
    %367 = vmatpush1.msra.mxu0 0.0
    %368 = vmatprep.subr.mxu0 0.0
    %369 = vmatpush1.msra.mxu0 0.0
    %370 = vmatprep.subr.mxu0 0.0
    %371 = vmatpush1.msra.mxu0 0.0
    %372 = vmatprep.subr.mxu0 0.0
    %373 = vmatpush1.msra.mxu0 0.0
    %374 = vmatprep.subr.mxu0 0.0
    %375 = vmatpush1.msra.mxu0 0.0
    %376 = vmatprep.mubr.f32.mxu0 0.0
    %377 = vmatmul.mubr.f32.gmra.mrb[0].mxu0 %v307
    %v378 = vpop.f32.mrb[0].mxu0
    %v379 = vadd.f32 0.0, %v378
    %v380 = vpop.f32.mrb[0].mxu0
    %381 = vmatprep.mubr.f32.mxu0 0.0
    %382 = vmatmul.mubr.f32.gmra.mrb[0].mxu0 %v310
    %v383 = vpop.f32.mrb[0].mxu0
    %v384 = vadd.f32 0.0, %v383
    %v385 = vpop.f32.mrb[0].mxu0
    %386 = vdwg.mxu0
    %387 = vrot.lane.b32.xlu0 %v163, 120
    %v388 = vpop.permute.xlu0 %387
    %389 = vrot.lane.b32.xlu0 %v168, 120
    %v390 = vpop.permute.xlu0 %389
    %391 = vrot.lane.b32.xlu0 %v163, 88
    %v392 = vpop.permute.xlu0 %391
    %393 = vrot.lane.b32.xlu0 %v168, 88
    %v394 = vpop.permute.xlu0 %393
    %v395 = vsel %vm189, %v388, 0
    %v397 = vsel %vm189, %v390, 0
    %v399 = vsel %vm189, %v392, 0
    %v401 = vsel %vm189, %v394, 0
    %403 = vmatprep.subr.mxu0 0.0
    %404 = vmatpush1.xpose.msra.mxu0 %v399
    %405 = vmatprep.subr.mxu0 0.0
    %406 = vmatpush1.xpose.msra.mxu0 %v401
    %407 = vmatprep.subr.mxu0 0.0
    %408 = vmatpush1.xpose.msra.mxu0 0.0
    %409 = vmatprep.subr.mxu0 0.0
    %410 = vmatpush1.xpose.msra.mxu0 0.0
    %411 = vmatprep.subr.mxu0 0.0
    %412 = vmatpush1.xpose.msra.mxu0 0.0
    %413 = vmatprep.subr.mxu0 0.0
    %414 = vmatpush1.xpose.msra.mxu0 0.0
    %415 = vmatprep.subr.mxu0 0.0
    %416 = vmatpush1.xpose.msra.mxu0 0.0
    %417 = vmatprep.subr.mxu0 0.0
    %418 = vmatpush1.xpose.msra.mxu0 0.0
    %419 = vmatprep.subr.mxu0 0.0
    %420 = vmatpush1.xpose.msra.mxu0 0.0
    %421 = vmatprep.subr.mxu0 0.0
    %422 = vmatpush1.xpose.msra.mxu0 0.0
    %423 = vmatprep.subr.mxu0 0.0
    %424 = vmatpush1.xpose.msra.mxu0 0.0
    %425 = vmatprep.subr.mxu0 0.0
    %426 = vmatpush1.xpose.msra.mxu0 0.0
    %427 = vmatprep.subr.mxu0 0.0
    %428 = vmatpush1.xpose.msra.mxu0 0.0
    %429 = vmatprep.subr.mxu0 0.0
    %430 = vmatpush1.xpose.msra.mxu0 0.0
    %431 = vmatprep.subr.mxu0 0.0
    %432 = vmatpush1.xpose.msra.mxu0 0.0
    %433 = vmatprep.subr.mxu0 0.0
    %434 = vmatpush1.xpose.msra.mxu0 0.0
    %435 = vmatprep.subr.mxu0 0.0
    %436 = vmatpush1.xpose.msra.mxu0 0.0
    %437 = vmatprep.subr.mxu0 0.0
    %438 = vmatpush1.xpose.msra.mxu0 0.0
    %439 = vmatprep.subr.mxu0 0.0
    %440 = vmatpush1.xpose.msra.mxu0 0.0
    %441 = vmatprep.subr.mxu0 0.0
    %442 = vmatpush1.xpose.msra.mxu0 0.0
    %443 = vmatprep.subr.mxu0 0.0
    %444 = vmatpush1.xpose.msra.mxu0 0.0
    %445 = vmatprep.subr.mxu0 0.0
    %446 = vmatpush1.xpose.msra.mxu0 0.0
    %447 = vmatprep.subr.mxu0 0.0
    %448 = vmatpush1.xpose.msra.mxu0 0.0
    %449 = vmatprep.subr.mxu0 0.0
    %450 = vmatpush1.xpose.msra.mxu0 0.0
    %451 = vmatprep.subr.mxu0 0.0
    %452 = vmatpush1.xpose.msra.mxu0 0.0
    %453 = vmatprep.subr.mxu0 0.0
    %454 = vmatpush1.xpose.msra.mxu0 0.0
    %455 = vmatprep.subr.mxu0 0.0
    %456 = vmatpush1.xpose.msra.mxu0 0.0
    %457 = vmatprep.subr.mxu0 0.0
    %458 = vmatpush1.xpose.msra.mxu0 0.0
    %459 = vmatprep.subr.mxu0 0.0
    %460 = vmatpush1.xpose.msra.mxu0 0.0
    %461 = vmatprep.subr.mxu0 0.0
    %462 = vmatpush1.xpose.msra.mxu0 0.0
    %463 = vmatprep.subr.mxu0 0.0
    %464 = vmatpush1.xpose.msra.mxu0 0.0
    %465 = vmatprep.subr.mxu0 0.0
    %466 = vmatpush1.xpose.msra.mxu0 0.0
    %467 = vmatprep.mubr.f32.mxu0 0.0
    %468 = vmatmul.mubr.f32.gmra.mrb[0].mxu0 %v395
    %v469 = vpop.f32.mrb[0].mxu0
    %v470 = vadd.f32 0.0, %v469
    %v471 = vpop.f32.mrb[0].mxu0
    %472 = vmatprep.mubr.f32.mxu0 0.0
    %473 = vmatmul.mubr.f32.gmra.mrb[0].mxu0 %v397
    %v474 = vpop.f32.mrb[0].mxu0
    %v475 = vadd.f32 0.0, %v474
    %v476 = vpop.f32.mrb[0].mxu0
    %477 = vdwg.mxu0
    %v478 = vmul.f32 %v470, 0.35355338
    %v479 = vmul.f32 %v475, 0.35355338
    %v480 = vadd.f32 %v478, %v181
    %v481 = vadd.f32 %v479, %v182
    %v482 = vsel %vm277, %v480, -inf
    %483 = vmax.xlane.f32.xlu0 %v482
    %v484 = vpop.xlane.xlu0 %483
    %v485 = vsel %vm277, %v481, -inf
    %486 = vmax.xlane.f32.xlu0 %v485
    %v487 = vpop.xlane.xlu0 %486
    %v488 = vsub.f32 %v480, %v484
    %v489 = vsub.f32 %v481, %v487
    %v490 = vmul.f32 %v488, 1.442695
    %v491 = vpow.pop %v490
    %v492 = vmul.f32 %v489, 1.442695
    %v493 = vpow.pop %v492
    %v494 = vsel %vm277, %v491, 0.0
    %495 = vadd.xlane.f32.xlu0 %v494
    %v496 = vpop.xlane.xlu0 %495
    %v497 = vsel %vm277, %v493, 0.0
    %498 = vadd.xlane.f32.xlu0 %v497
    %v499 = vpop.xlane.xlu0 %498
    %v500 = vrcp.pop %v496
    %v501 = vrcp.pop %v499
    %v502 = vmul.f32 %v491, %v500
    %v503 = vmul.f32 %v493, %v501
    %504 = vrot.lane.b32.xlu0 %v163, 56
    %v505 = vpop.permute.xlu0 %504
    %506 = vrot.lane.b32.xlu0 %v168, 56
    %v507 = vpop.permute.xlu0 %506
    %v511 = vsel %vm277, %v502, 0
    %v514 = vsel %vm277, %v503, 0
    %516 = vmatprep.subr.mxu0 0.0
    %517 = vmatpush1.msra.mxu0 %v505
    %518 = vmatprep.subr.mxu0 0.0
    %519 = vmatpush1.msra.mxu0 %v507
    %520 = vmatprep.subr.mxu0 0.0
    %521 = vmatpush1.msra.mxu0 0.0
    %522 = vmatprep.subr.mxu0 0.0
    %523 = vmatpush1.msra.mxu0 0.0
    %524 = vmatprep.subr.mxu0 0.0
    %525 = vmatpush1.msra.mxu0 0.0
    %526 = vmatprep.subr.mxu0 0.0
    %527 = vmatpush1.msra.mxu0 0.0
    %528 = vmatprep.subr.mxu0 0.0
    %529 = vmatpush1.msra.mxu0 0.0
    %530 = vmatprep.subr.mxu0 0.0
    %531 = vmatpush1.msra.mxu0 0.0
    %532 = vmatprep.subr.mxu0 0.0
    %533 = vmatpush1.msra.mxu0 0.0
    %534 = vmatprep.subr.mxu0 0.0
    %535 = vmatpush1.msra.mxu0 0.0
    %536 = vmatprep.subr.mxu0 0.0
    %537 = vmatpush1.msra.mxu0 0.0
    %538 = vmatprep.subr.mxu0 0.0
    %539 = vmatpush1.msra.mxu0 0.0
    %540 = vmatprep.subr.mxu0 0.0
    %541 = vmatpush1.msra.mxu0 0.0
    %542 = vmatprep.subr.mxu0 0.0
    %543 = vmatpush1.msra.mxu0 0.0
    %544 = vmatprep.subr.mxu0 0.0
    %545 = vmatpush1.msra.mxu0 0.0
    %546 = vmatprep.subr.mxu0 0.0
    %547 = vmatpush1.msra.mxu0 0.0
    %548 = vmatprep.subr.mxu0 0.0
    %549 = vmatpush1.msra.mxu0 0.0
    %550 = vmatprep.subr.mxu0 0.0
    %551 = vmatpush1.msra.mxu0 0.0
    %552 = vmatprep.subr.mxu0 0.0
    %553 = vmatpush1.msra.mxu0 0.0
    %554 = vmatprep.subr.mxu0 0.0
    %555 = vmatpush1.msra.mxu0 0.0
    %556 = vmatprep.subr.mxu0 0.0
    %557 = vmatpush1.msra.mxu0 0.0
    %558 = vmatprep.subr.mxu0 0.0
    %559 = vmatpush1.msra.mxu0 0.0
    %560 = vmatprep.subr.mxu0 0.0
    %561 = vmatpush1.msra.mxu0 0.0
    %562 = vmatprep.subr.mxu0 0.0
    %563 = vmatpush1.msra.mxu0 0.0
    %564 = vmatprep.subr.mxu0 0.0
    %565 = vmatpush1.msra.mxu0 0.0
    %566 = vmatprep.subr.mxu0 0.0
    %567 = vmatpush1.msra.mxu0 0.0
    %568 = vmatprep.subr.mxu0 0.0
    %569 = vmatpush1.msra.mxu0 0.0
    %570 = vmatprep.subr.mxu0 0.0
    %571 = vmatpush1.msra.mxu0 0.0
    %572 = vmatprep.subr.mxu0 0.0
    %573 = vmatpush1.msra.mxu0 0.0
    %574 = vmatprep.subr.mxu0 0.0
    %575 = vmatpush1.msra.mxu0 0.0
    %576 = vmatprep.subr.mxu0 0.0
    %577 = vmatpush1.msra.mxu0 0.0
    %578 = vmatprep.subr.mxu0 0.0
    %579 = vmatpush1.msra.mxu0 0.0
    %580 = vmatprep.mubr.f32.mxu0 0.0
    %581 = vmatmul.mubr.f32.gmra.mrb[0].mxu0 %v511
    %v582 = vpop.f32.mrb[0].mxu0
    %v583 = vadd.f32 0.0, %v582
    %v584 = vpop.f32.mrb[0].mxu0
    %585 = vmatprep.mubr.f32.mxu0 0.0
    %586 = vmatmul.mubr.f32.gmra.mrb[0].mxu0 %v514
    %v587 = vpop.f32.mrb[0].mxu0
    %v588 = vadd.f32 0.0, %v587
    %v589 = vpop.f32.mrb[0].mxu0
    %590 = vdwg.mxu0
    %591 = vrot.lane.b32.xlu0 %v163, 112
    %v592 = vpop.permute.xlu0 %591
    %593 = vrot.lane.b32.xlu0 %v168, 112
    %v594 = vpop.permute.xlu0 %593
    %595 = vrot.lane.b32.xlu0 %v163, 80
    %v596 = vpop.permute.xlu0 %595
    %597 = vrot.lane.b32.xlu0 %v168, 80
    %v598 = vpop.permute.xlu0 %597
    %v599 = vsel %vm189, %v592, 0
    %v601 = vsel %vm189, %v594, 0
    %v603 = vsel %vm189, %v596, 0
    %v605 = vsel %vm189, %v598, 0
    %607 = vmatprep.subr.mxu0 0.0
    %608 = vmatpush1.xpose.msra.mxu0 %v603
    %609 = vmatprep.subr.mxu0 0.0
    %610 = vmatpush1.xpose.msra.mxu0 %v605
    %611 = vmatprep.subr.mxu0 0.0
    %612 = vmatpush1.xpose.msra.mxu0 0.0
    %613 = vmatprep.subr.mxu0 0.0
    %614 = vmatpush1.xpose.msra.mxu0 0.0
    %615 = vmatprep.subr.mxu0 0.0
    %616 = vmatpush1.xpose.msra.mxu0 0.0
    %617 = vmatprep.subr.mxu0 0.0
    %618 = vmatpush1.xpose.msra.mxu0 0.0
    %619 = vmatprep.subr.mxu0 0.0
    %620 = vmatpush1.xpose.msra.mxu0 0.0
    %621 = vmatprep.subr.mxu0 0.0
    %622 = vmatpush1.xpose.msra.mxu0 0.0
    %623 = vmatprep.subr.mxu0 0.0
    %624 = vmatpush1.xpose.msra.mxu0 0.0
    %625 = vmatprep.subr.mxu0 0.0
    %626 = vmatpush1.xpose.msra.mxu0 0.0
    %627 = vmatprep.subr.mxu0 0.0
    %628 = vmatpush1.xpose.msra.mxu0 0.0
    %629 = vmatprep.subr.mxu0 0.0
    %630 = vmatpush1.xpose.msra.mxu0 0.0
    %631 = vmatprep.subr.mxu0 0.0
    %632 = vmatpush1.xpose.msra.mxu0 0.0
    %633 = vmatprep.subr.mxu0 0.0
    %634 = vmatpush1.xpose.msra.mxu0 0.0
    %635 = vmatprep.subr.mxu0 0.0
    %636 = vmatpush1.xpose.msra.mxu0 0.0
    %637 = vmatprep.subr.mxu0 0.0
    %638 = vmatpush1.xpose.msra.mxu0 0.0
    %639 = vmatprep.subr.mxu0 0.0
    %640 = vmatpush1.xpose.msra.mxu0 0.0
    %641 = vmatprep.subr.mxu0 0.0
    %642 = vmatpush1.xpose.msra.mxu0 0.0
    %643 = vmatprep.subr.mxu0 0.0
    %644 = vmatpush1.xpose.msra.mxu0 0.0
    %645 = vmatprep.subr.mxu0 0.0
    %646 = vmatpush1.xpose.msra.mxu0 0.0
    %647 = vmatprep.subr.mxu0 0.0
    %648 = vmatpush1.xpose.msra.mxu0 0.0
    %649 = vmatprep.subr.mxu0 0.0
    %650 = vmatpush1.xpose.msra.mxu0 0.0
    %651 = vmatprep.subr.mxu0 0.0
    %652 = vmatpush1.xpose.msra.mxu0 0.0
    %653 = vmatprep.subr.mxu0 0.0
    %654 = vmatpush1.xpose.msra.mxu0 0.0
    %655 = vmatprep.subr.mxu0 0.0
    %656 = vmatpush1.xpose.msra.mxu0 0.0
    %657 = vmatprep.subr.mxu0 0.0
    %658 = vmatpush1.xpose.msra.mxu0 0.0
    %659 = vmatprep.subr.mxu0 0.0
    %660 = vmatpush1.xpose.msra.mxu0 0.0
    %661 = vmatprep.subr.mxu0 0.0
    %662 = vmatpush1.xpose.msra.mxu0 0.0
    %663 = vmatprep.subr.mxu0 0.0
    %664 = vmatpush1.xpose.msra.mxu0 0.0
    %665 = vmatprep.subr.mxu0 0.0
    %666 = vmatpush1.xpose.msra.mxu0 0.0
    %667 = vmatprep.subr.mxu0 0.0
    %668 = vmatpush1.xpose.msra.mxu0 0.0
    %669 = vmatprep.subr.mxu0 0.0
    %670 = vmatpush1.xpose.msra.mxu0 0.0
    %671 = vmatprep.mubr.f32.mxu0 0.0
    %672 = vmatmul.mubr.f32.gmra.mrb[0].mxu0 %v599
    %v673 = vpop.f32.mrb[0].mxu0
    %v674 = vadd.f32 0.0, %v673
    %v675 = vpop.f32.mrb[0].mxu0
    %676 = vmatprep.mubr.f32.mxu0 0.0
    %677 = vmatmul.mubr.f32.gmra.mrb[0].mxu0 %v601
    %v678 = vpop.f32.mrb[0].mxu0
    %v679 = vadd.f32 0.0, %v678
    %v680 = vpop.f32.mrb[0].mxu0
    %681 = vdwg.mxu0
    %v682 = vmul.f32 %v674, 0.35355338
    %v683 = vmul.f32 %v679, 0.35355338
    %v684 = vadd.f32 %v682, %v181
    %v685 = vadd.f32 %v683, %v182
    %v686 = vsel %vm277, %v684, -inf
    %687 = vmax.xlane.f32.xlu0 %v686
    %v688 = vpop.xlane.xlu0 %687
    %v689 = vsel %vm277, %v685, -inf
    %690 = vmax.xlane.f32.xlu0 %v689
    %v691 = vpop.xlane.xlu0 %690
    %v692 = vsub.f32 %v684, %v688
    %v693 = vsub.f32 %v685, %v691
    %v694 = vmul.f32 %v692, 1.442695
    %v695 = vpow.pop %v694
    %v696 = vmul.f32 %v693, 1.442695
    %v697 = vpow.pop %v696
    %v698 = vsel %vm277, %v695, 0.0
    %699 = vadd.xlane.f32.xlu0 %v698
    %v700 = vpop.xlane.xlu0 %699
    %v701 = vsel %vm277, %v697, 0.0
    %702 = vadd.xlane.f32.xlu0 %v701
    %v703 = vpop.xlane.xlu0 %702
    %v704 = vrcp.pop %v700
    %v705 = vrcp.pop %v703
    %v706 = vmul.f32 %v695, %v704
    %v707 = vmul.f32 %v697, %v705
    %708 = vrot.lane.b32.xlu0 %v163, 48
    %v709 = vpop.permute.xlu0 %708
    %710 = vrot.lane.b32.xlu0 %v168, 48
    %v711 = vpop.permute.xlu0 %710
    %v715 = vsel %vm277, %v706, 0
    %v718 = vsel %vm277, %v707, 0
    %720 = vmatprep.subr.mxu0 0.0
    %721 = vmatpush1.msra.mxu0 %v709
    %722 = vmatprep.subr.mxu0 0.0
    %723 = vmatpush1.msra.mxu0 %v711
    %724 = vmatprep.subr.mxu0 0.0
    %725 = vmatpush1.msra.mxu0 0.0
    %726 = vmatprep.subr.mxu0 0.0
    %727 = vmatpush1.msra.mxu0 0.0
    %728 = vmatprep.subr.mxu0 0.0
    %729 = vmatpush1.msra.mxu0 0.0
    %730 = vmatprep.subr.mxu0 0.0
    %731 = vmatpush1.msra.mxu0 0.0
    %732 = vmatprep.subr.mxu0 0.0
    %733 = vmatpush1.msra.mxu0 0.0
    %734 = vmatprep.subr.mxu0 0.0
    %735 = vmatpush1.msra.mxu0 0.0
    %736 = vmatprep.subr.mxu0 0.0
    %737 = vmatpush1.msra.mxu0 0.0
    %738 = vmatprep.subr.mxu0 0.0
    %739 = vmatpush1.msra.mxu0 0.0
    %740 = vmatprep.subr.mxu0 0.0
    %741 = vmatpush1.msra.mxu0 0.0
    %742 = vmatprep.subr.mxu0 0.0
    %743 = vmatpush1.msra.mxu0 0.0
    %744 = vmatprep.subr.mxu0 0.0
    %745 = vmatpush1.msra.mxu0 0.0
    %746 = vmatprep.subr.mxu0 0.0
    %747 = vmatpush1.msra.mxu0 0.0
    %748 = vmatprep.subr.mxu0 0.0
    %749 = vmatpush1.msra.mxu0 0.0
    %750 = vmatprep.subr.mxu0 0.0
    %751 = vmatpush1.msra.mxu0 0.0
    %752 = vmatprep.subr.mxu0 0.0
    %753 = vmatpush1.msra.mxu0 0.0
    %754 = vmatprep.subr.mxu0 0.0
    %755 = vmatpush1.msra.mxu0 0.0
    %756 = vmatprep.subr.mxu0 0.0
    %757 = vmatpush1.msra.mxu0 0.0
    %758 = vmatprep.subr.mxu0 0.0
    %759 = vmatpush1.msra.mxu0 0.0
    %760 = vmatprep.subr.mxu0 0.0
    %761 = vmatpush1.msra.mxu0 0.0
    %762 = vmatprep.subr.mxu0 0.0
    %763 = vmatpush1.msra.mxu0 0.0
    %764 = vmatprep.subr.mxu0 0.0
    %765 = vmatpush1.msra.mxu0 0.0
    %766 = vmatprep.subr.mxu0 0.0
    %767 = vmatpush1.msra.mxu0 0.0
    %768 = vmatprep.subr.mxu0 0.0
    %769 = vmatpush1.msra.mxu0 0.0
    %770 = vmatprep.subr.mxu0 0.0
    %771 = vmatpush1.msra.mxu0 0.0
    %772 = vmatprep.subr.mxu0 0.0
    %773 = vmatpush1.msra.mxu0 0.0
    %774 = vmatprep.subr.mxu0 0.0
    %775 = vmatpush1.msra.mxu0 0.0
    %776 = vmatprep.subr.mxu0 0.0
    %777 = vmatpush1.msra.mxu0 0.0
    %778 = vmatprep.subr.mxu0 0.0
    %779 = vmatpush1.msra.mxu0 0.0
    %780 = vmatprep.subr.mxu0 0.0
    %781 = vmatpush1.msra.mxu0 0.0
    %782 = vmatprep.subr.mxu0 0.0
    %783 = vmatpush1.msra.mxu0 0.0
    %784 = vmatprep.mubr.f32.mxu0 0.0
    %785 = vmatmul.mubr.f32.gmra.mrb[0].mxu0 %v715
    %v786 = vpop.f32.mrb[0].mxu0
    %v787 = vadd.f32 0.0, %v786
    %v788 = vpop.f32.mrb[0].mxu0
    %789 = vmatprep.mubr.f32.mxu0 0.0
    %790 = vmatmul.mubr.f32.gmra.mrb[0].mxu0 %v718
    %v791 = vpop.f32.mrb[0].mxu0
    %v792 = vadd.f32 0.0, %v791
    %v793 = vpop.f32.mrb[0].mxu0
    %794 = vdwg.mxu0
    %795 = vrot.lane.b32.xlu0 %v163, 104
    %v796 = vpop.permute.xlu0 %795
    %797 = vrot.lane.b32.xlu0 %v168, 104
    %v798 = vpop.permute.xlu0 %797
    %799 = vrot.lane.b32.xlu0 %v163, 72
    %v800 = vpop.permute.xlu0 %799
    %801 = vrot.lane.b32.xlu0 %v168, 72
    %v802 = vpop.permute.xlu0 %801
    %v803 = vsel %vm189, %v796, 0
    %v805 = vsel %vm189, %v798, 0
    %v807 = vsel %vm189, %v800, 0
    %v809 = vsel %vm189, %v802, 0
    %811 = vmatprep.subr.mxu0 0.0
    %812 = vmatpush1.xpose.msra.mxu0 %v807
    %813 = vmatprep.subr.mxu0 0.0
    %814 = vmatpush1.xpose.msra.mxu0 %v809
    %815 = vmatprep.subr.mxu0 0.0
    %816 = vmatpush1.xpose.msra.mxu0 0.0
    %817 = vmatprep.subr.mxu0 0.0
    %818 = vmatpush1.xpose.msra.mxu0 0.0
    %819 = vmatprep.subr.mxu0 0.0
    %820 = vmatpush1.xpose.msra.mxu0 0.0
    %821 = vmatprep.subr.mxu0 0.0
    %822 = vmatpush1.xpose.msra.mxu0 0.0
    %823 = vmatprep.subr.mxu0 0.0
    %824 = vmatpush1.xpose.msra.mxu0 0.0
    %825 = vmatprep.subr.mxu0 0.0
    %826 = vmatpush1.xpose.msra.mxu0 0.0
    %827 = vmatprep.subr.mxu0 0.0
    %828 = vmatpush1.xpose.msra.mxu0 0.0
    %829 = vmatprep.subr.mxu0 0.0
    %830 = vmatpush1.xpose.msra.mxu0 0.0
    %831 = vmatprep.subr.mxu0 0.0
    %832 = vmatpush1.xpose.msra.mxu0 0.0
    %833 = vmatprep.subr.mxu0 0.0
    %834 = vmatpush1.xpose.msra.mxu0 0.0
    %835 = vmatprep.subr.mxu0 0.0
    %836 = vmatpush1.xpose.msra.mxu0 0.0
    %837 = vmatprep.subr.mxu0 0.0
    %838 = vmatpush1.xpose.msra.mxu0 0.0
    %839 = vmatprep.subr.mxu0 0.0
    %840 = vmatpush1.xpose.msra.mxu0 0.0
    %841 = vmatprep.subr.mxu0 0.0
    %842 = vmatpush1.xpose.msra.mxu0 0.0
    %843 = vmatprep.subr.mxu0 0.0
    %844 = vmatpush1.xpose.msra.mxu0 0.0
    %845 = vmatprep.subr.mxu0 0.0
    %846 = vmatpush1.xpose.msra.mxu0 0.0
    %847 = vmatprep.subr.mxu0 0.0
    %848 = vmatpush1.xpose.msra.mxu0 0.0
    %849 = vmatprep.subr.mxu0 0.0
    %850 = vmatpush1.xpose.msra.mxu0 0.0
    %851 = vmatprep.subr.mxu0 0.0
    %852 = vmatpush1.xpose.msra.mxu0 0.0
    %853 = vmatprep.subr.mxu0 0.0
    %854 = vmatpush1.xpose.msra.mxu0 0.0
    %855 = vmatprep.subr.mxu0 0.0
    %856 = vmatpush1.xpose.msra.mxu0 0.0
    %857 = vmatprep.subr.mxu0 0.0
    %858 = vmatpush1.xpose.msra.mxu0 0.0
    %859 = vmatprep.subr.mxu0 0.0
    %860 = vmatpush1.xpose.msra.mxu0 0.0
    %861 = vmatprep.subr.mxu0 0.0
    %862 = vmatpush1.xpose.msra.mxu0 0.0
    %863 = vmatprep.subr.mxu0 0.0
    %864 = vmatpush1.xpose.msra.mxu0 0.0
    %865 = vmatprep.subr.mxu0 0.0
    %866 = vmatpush1.xpose.msra.mxu0 0.0
    %867 = vmatprep.subr.mxu0 0.0
    %868 = vmatpush1.xpose.msra.mxu0 0.0
    %869 = vmatprep.subr.mxu0 0.0
    %870 = vmatpush1.xpose.msra.mxu0 0.0
    %871 = vmatprep.subr.mxu0 0.0
    %872 = vmatpush1.xpose.msra.mxu0 0.0
    %873 = vmatprep.subr.mxu0 0.0
    %874 = vmatpush1.xpose.msra.mxu0 0.0
    %875 = vmatprep.mubr.f32.mxu0 0.0
    %876 = vmatmul.mubr.f32.gmra.mrb[0].mxu0 %v803
    %v877 = vpop.f32.mrb[0].mxu0
    %v878 = vadd.f32 0.0, %v877
    %v879 = vpop.f32.mrb[0].mxu0
    %880 = vmatprep.mubr.f32.mxu0 0.0
    %881 = vmatmul.mubr.f32.gmra.mrb[0].mxu0 %v805
    %v882 = vpop.f32.mrb[0].mxu0
    %v883 = vadd.f32 0.0, %v882
    %v884 = vpop.f32.mrb[0].mxu0
    %885 = vdwg.mxu0
    %v886 = vmul.f32 %v878, 0.35355338
    %v887 = vmul.f32 %v883, 0.35355338
    %v888 = vadd.f32 %v886, %v181
    %v889 = vadd.f32 %v887, %v182
    %v890 = vsel %vm277, %v888, -inf
    %891 = vmax.xlane.f32.xlu0 %v890
    %v892 = vpop.xlane.xlu0 %891
    %v893 = vsel %vm277, %v889, -inf
    %894 = vmax.xlane.f32.xlu0 %v893
    %v895 = vpop.xlane.xlu0 %894
    %v896 = vsub.f32 %v888, %v892
    %v897 = vsub.f32 %v889, %v895
    %v898 = vmul.f32 %v896, 1.442695
    %v899 = vpow.pop %v898
    %v900 = vmul.f32 %v897, 1.442695
    %v901 = vpow.pop %v900
    %v902 = vsel %vm277, %v899, 0.0
    %903 = vadd.xlane.f32.xlu0 %v902
    %v904 = vpop.xlane.xlu0 %903
    %v905 = vsel %vm277, %v901, 0.0
    %906 = vadd.xlane.f32.xlu0 %v905
    %v907 = vpop.xlane.xlu0 %906
    %v908 = vrcp.pop %v904
    %v909 = vrcp.pop %v907
    %v910 = vmul.f32 %v899, %v908
    %v911 = vmul.f32 %v901, %v909
    %912 = vrot.lane.b32.xlu0 %v163, 40
    %v913 = vpop.permute.xlu0 %912
    %914 = vrot.lane.b32.xlu0 %v168, 40
    %v915 = vpop.permute.xlu0 %914
    %v919 = vsel %vm277, %v910, 0
    %v922 = vsel %vm277, %v911, 0
    %924 = vmatprep.subr.mxu0 0.0
    %925 = vmatpush1.msra.mxu0 %v913
    %926 = vmatprep.subr.mxu0 0.0
    %927 = vmatpush1.msra.mxu0 %v915
    %928 = vmatprep.subr.mxu0 0.0
    %929 = vmatpush1.msra.mxu0 0.0
    %930 = vmatprep.subr.mxu0 0.0
    %931 = vmatpush1.msra.mxu0 0.0
    %932 = vmatprep.subr.mxu0 0.0
    %933 = vmatpush1.msra.mxu0 0.0
    %934 = vmatprep.subr.mxu0 0.0
    %935 = vmatpush1.msra.mxu0 0.0
    %936 = vmatprep.subr.mxu0 0.0
    %937 = vmatpush1.msra.mxu0 0.0
    %938 = vmatprep.subr.mxu0 0.0
    %939 = vmatpush1.msra.mxu0 0.0
    %940 = vmatprep.subr.mxu0 0.0
    %941 = vmatpush1.msra.mxu0 0.0
    %942 = vmatprep.subr.mxu0 0.0
    %943 = vmatpush1.msra.mxu0 0.0
    %944 = vmatprep.subr.mxu0 0.0
    %945 = vmatpush1.msra.mxu0 0.0
    %946 = vmatprep.subr.mxu0 0.0
    %947 = vmatpush1.msra.mxu0 0.0
    %948 = vmatprep.subr.mxu0 0.0
    %949 = vmatpush1.msra.mxu0 0.0
    %950 = vmatprep.subr.mxu0 0.0
    %951 = vmatpush1.msra.mxu0 0.0
    %952 = vmatprep.subr.mxu0 0.0
    %953 = vmatpush1.msra.mxu0 0.0
    %954 = vmatprep.subr.mxu0 0.0
    %955 = vmatpush1.msra.mxu0 0.0
    %956 = vmatprep.subr.mxu0 0.0
    %957 = vmatpush1.msra.mxu0 0.0
    %958 = vmatprep.subr.mxu0 0.0
    %959 = vmatpush1.msra.mxu0 0.0
    %960 = vmatprep.subr.mxu0 0.0
    %961 = vmatpush1.msra.mxu0 0.0
    %962 = vmatprep.subr.mxu0 0.0
    %963 = vmatpush1.msra.mxu0 0.0
    %964 = vmatprep.subr.mxu0 0.0
    %965 = vmatpush1.msra.mxu0 0.0
    %966 = vmatprep.subr.mxu0 0.0
    %967 = vmatpush1.msra.mxu0 0.0
    %968 = vmatprep.subr.mxu0 0.0
    %969 = vmatpush1.msra.mxu0 0.0
    %970 = vmatprep.subr.mxu0 0.0
    %971 = vmatpush1.msra.mxu0 0.0
    %972 = vmatprep.subr.mxu0 0.0
    %973 = vmatpush1.msra.mxu0 0.0
    %974 = vmatprep.subr.mxu0 0.0
    %975 = vmatpush1.msra.mxu0 0.0
    %976 = vmatprep.subr.mxu0 0.0
    %977 = vmatpush1.msra.mxu0 0.0
    %978 = vmatprep.subr.mxu0 0.0
    %979 = vmatpush1.msra.mxu0 0.0
    %980 = vmatprep.subr.mxu0 0.0
    %981 = vmatpush1.msra.mxu0 0.0
    %982 = vmatprep.subr.mxu0 0.0
    %983 = vmatpush1.msra.mxu0 0.0
    %984 = vmatprep.subr.mxu0 0.0
    %985 = vmatpush1.msra.mxu0 0.0
    %986 = vmatprep.subr.mxu0 0.0
    %987 = vmatpush1.msra.mxu0 0.0
    %988 = vmatprep.mubr.f32.mxu0 0.0
    %989 = vmatmul.mubr.f32.gmra.mrb[0].mxu0 %v919
    %v990 = vpop.f32.mrb[0].mxu0
    %v991 = vadd.f32 0.0, %v990
    %v992 = vpop.f32.mrb[0].mxu0
    %993 = vmatprep.mubr.f32.mxu0 0.0
    %994 = vmatmul.mubr.f32.gmra.mrb[0].mxu0 %v922
    %v995 = vpop.f32.mrb[0].mxu0
    %v996 = vadd.f32 0.0, %v995
    %v997 = vpop.f32.mrb[0].mxu0
    %998 = vdwg.mxu0
    %1001 = vrot.lane.b32.xlu0 %v583, 8
    %v1002 = vpop.permute.xlu0 %1001
    %1003 = vrot.lane.b32.xlu0 %v588, 8
    %v1004 = vpop.permute.xlu0 %1003
    %1009 = vrot.lane.b32.xlu0 %v787, 16
    %v1010 = vpop.permute.xlu0 %1009
    %1011 = vrot.lane.b32.xlu0 %v792, 16
    %v1012 = vpop.permute.xlu0 %1011
    %1017 = vrot.lane.b32.xlu0 %v991, 24
    %v1018 = vpop.permute.xlu0 %1017
    %1019 = vrot.lane.b32.xlu0 %v996, 24
    %v1020 = vpop.permute.xlu0 %1019
    %v1023 = vsel %vm189, %v379, %v1002
    %v1024 = vsel %vm189, %v384, %v1004
    %v1025 = vsel %vm277, %v1023, %v1010
    %v1026 = vsel %vm277, %v1024, %v1012
    %vm1027 = vcmask 195584
    %v1028 = vsel %vm1027, %v1025, %v1018
    %v1029 = vsel %vm1027, %v1026, %v1020
    %v1030 = vld [vmem:[#allocation6 + $0x20] sm:$0xff]
    %v1031 = vld [vmem:[#allocation6 + $0x28] sm:$0xff]
    %v1032 = vld [vmem:[#allocation6 + $0x30] sm:$0xff]
    %v1033 = vld [vmem:[#allocation6 + $0x38] sm:$0xff]
    %v1034 = vld [vmem:[#allocation7 + $0x1] sm:$0x1]
    %v1035 = vlaneseq
    %v1036 = vshrl.u32 %v1035, 7
    %v1037 = vsub.s32 0, %v1036
    %v1038 = vrot.slane %v1034, %v1037
    %v1040 = vsel %vm89, %v1028, 0
    %v1043 = vsel %vm89, %v1029, 0
    %1045 = vmatprep.subr.mxu0 0.0
    %1046 = vmatpush1.msra.mxu0 %v1030
    %1047 = vmatprep.subr.mxu0 0.0
    %1048 = vmatpush1.msra.mxu0 %v1031
    %1049 = vmatprep.subr.mxu0 0.0
    %1050 = vmatpush1.msra.mxu0 %v1032
    %1051 = vmatprep.subr.mxu0 0.0
    %1052 = vmatpush1.msra.mxu0 %v1033
    %1053 = vmatprep.subr.mxu0 0.0
    %1054 = vmatpush1.msra.mxu0 0.0
    %1055 = vmatprep.subr.mxu0 0.0
    %1056 = vmatpush1.msra.mxu0 0.0
    %1057 = vmatprep.subr.mxu0 0.0
    %1058 = vmatpush1.msra.mxu0 0.0
    %1059 = vmatprep.subr.mxu0 0.0
    %1060 = vmatpush1.msra.mxu0 0.0
    %1061 = vmatprep.subr.mxu0 0.0
    %1062 = vmatpush1.msra.mxu0 0.0
    %1063 = vmatprep.subr.mxu0 0.0
    %1064 = vmatpush1.msra.mxu0 0.0
    %1065 = vmatprep.subr.mxu0 0.0
    %1066 = vmatpush1.msra.mxu0 0.0
    %1067 = vmatprep.subr.mxu0 0.0
    %1068 = vmatpush1.msra.mxu0 0.0
    %1069 = vmatprep.subr.mxu0 0.0
    %1070 = vmatpush1.msra.mxu0 0.0
    %1071 = vmatprep.subr.mxu0 0.0
    %1072 = vmatpush1.msra.mxu0 0.0
    %1073 = vmatprep.subr.mxu0 0.0
    %1074 = vmatpush1.msra.mxu0 0.0
    %1075 = vmatprep.subr.mxu0 0.0
    %1076 = vmatpush1.msra.mxu0 0.0
    %1077 = vmatprep.subr.mxu0 0.0
    %1078 = vmatpush1.msra.mxu0 0.0
    %1079 = vmatprep.subr.mxu0 0.0
    %1080 = vmatpush1.msra.mxu0 0.0
    %1081 = vmatprep.subr.mxu0 0.0
    %1082 = vmatpush1.msra.mxu0 0.0
    %1083 = vmatprep.subr.mxu0 0.0
    %1084 = vmatpush1.msra.mxu0 0.0
    %1085 = vmatprep.subr.mxu0 0.0
    %1086 = vmatpush1.msra.mxu0 0.0
    %1087 = vmatprep.subr.mxu0 0.0
    %1088 = vmatpush1.msra.mxu0 0.0
    %1089 = vmatprep.subr.mxu0 0.0
    %1090 = vmatpush1.msra.mxu0 0.0
    %1091 = vmatprep.subr.mxu0 0.0
    %1092 = vmatpush1.msra.mxu0 0.0
    %1093 = vmatprep.subr.mxu0 0.0
    %1094 = vmatpush1.msra.mxu0 0.0
    %1095 = vmatprep.subr.mxu0 0.0
    %1096 = vmatpush1.msra.mxu0 0.0
    %1097 = vmatprep.subr.mxu0 0.0
    %1098 = vmatpush1.msra.mxu0 0.0
    %1099 = vmatprep.subr.mxu0 0.0
    %1100 = vmatpush1.msra.mxu0 0.0
    %1101 = vmatprep.subr.mxu0 0.0
    %1102 = vmatpush1.msra.mxu0 0.0
    %1103 = vmatprep.subr.mxu0 0.0
    %1104 = vmatpush1.msra.mxu0 0.0
    %1105 = vmatprep.subr.mxu0 0.0
    %1106 = vmatpush1.msra.mxu0 0.0
    %1107 = vmatprep.subr.mxu0 0.0
    %1108 = vmatpush1.msra.mxu0 0.0
    %1109 = vmatprep.mubr.f32.mxu0 0.0
    %1110 = vmatmul.mubr.f32.gmra.mrb[0].mxu0 %v1040
    %v1111 = vpop.f32.mrb[0].mxu0
    %v1112 = vadd.f32 %v1038, %v1111
    %v1113 = vpop.f32.mrb[0].mxu0
    %1114 = vmatprep.mubr.f32.mxu0 0.0
    %1115 = vmatmul.mubr.f32.gmra.mrb[0].mxu0 %v1043
    %v1116 = vpop.f32.mrb[0].mxu0
    %v1117 = vadd.f32 %v1038, %v1116
    %v1118 = vpop.f32.mrb[0].mxu0
    %1119 = vdwg.mxu0
    %v1120 = vadd.f32 %v78, %v1112
    %v1121 = vadd.f32 %v79, %v1117
    %v1122 = vld [vmem:[#allocation7 + $0x2] sm:$0x1]
    %v1123 = vld [vmem:[#allocation7 + $0x3] sm:$0x1]
    %v1124 = vsel %vm89, %v1120, 0.0
    %1125 = vadd.xlane.f32.xlu0 %v1124
    %v1126 = vpop.xlane.xlu0 %1125
    %v1127 = vsel %vm89, %v1121, 0.0
    %1128 = vadd.xlane.f32.xlu0 %v1127
    %v1129 = vpop.xlane.xlu0 %1128
    %v1130 = vrcp.pop 32.0
    %v1131 = vmul.f32 %v1126, %v1130
    %v1132 = vmul.f32 %v1129, %v1130
    %v1133 = vsub.f32 %v1120, %v1131
    %v1134 = vsub.f32 %v1121, %v1132
    %v1135 = vmul.f32 %v1133, %v1133
    %v1136 = vmul.f32 %v1134, %v1134
    %v1137 = vsel %vm89, %v1135, 0.0
    %1138 = vadd.xlane.f32.xlu0 %v1137
    %v1139 = vpop.xlane.xlu0 %1138
    %v1140 = vsel %vm89, %v1136, 0.0
    %1141 = vadd.xlane.f32.xlu0 %v1140
    %v1142 = vpop.xlane.xlu0 %1141
    %v1143 = vmul.f32 %v1139, %v1130
    %v1144 = vmul.f32 %v1142, %v1130
    %v1145 = vadd.f32 %v1143, 1e-05
    %v1146 = vadd.f32 %v1144, 1e-05
    %v1147 = vrsqrt.pop %v1145
    %v1148 = vrsqrt.pop %v1146
    %v1149 = vmul.f32 %v1133, %v1147
    %v1150 = vmul.f32 %v1134, %v1148
    %v1151 = vlaneseq
    %v1152 = vshrl.u32 %v1151, 7
    %v1153 = vsub.s32 0, %v1152
    %v1154 = vrot.slane %v1122, %v1153
    %v1155 = vmul.f32 %v1149, %v1154
    %v1156 = vmul.f32 %v1150, %v1154
    %v1157 = vlaneseq
    %v1158 = vshrl.u32 %v1157, 7
    %v1159 = vsub.s32 0, %v1158
    %v1160 = vrot.slane %v1123, %v1159
    %v1161 = vadd.f32 %v1155, %v1160
    %v1162 = vadd.f32 %v1156, %v1160
    %v1163 = vld [vmem:[#allocation6 + $0x40] sm:$0xff]
    %v1164 = vld [vmem:[#allocation6 + $0x48] sm:$0xff]
    %v1165 = vld [vmem:[#allocation6 + $0x50] sm:$0xff]
    %v1166 = vld [vmem:[#allocation6 + $0x58] sm:$0xff]
    %v1167 = vld [vmem:[#allocation7 + $0x4] sm:$0x1]
    %v1168 = vlaneseq
    %v1169 = vshrl.u32 %v1168, 7
    %v1170 = vsub.s32 0, %v1169
    %v1171 = vrot.slane %v1167, %v1170
    %v1173 = vsel %vm89, %v1161, 0
    %v1176 = vsel %vm89, %v1162, 0
    %1178 = vmatprep.subr.mxu0 0.0
    %1179 = vmatpush1.msra.mxu0 %v1163
    %1180 = vmatprep.subr.mxu0 0.0
    %1181 = vmatpush1.msra.mxu0 %v1164
    %1182 = vmatprep.subr.mxu0 0.0
    %1183 = vmatpush1.msra.mxu0 %v1165
    %1184 = vmatprep.subr.mxu0 0.0
    %1185 = vmatpush1.msra.mxu0 %v1166
    %1186 = vmatprep.subr.mxu0 0.0
    %1187 = vmatpush1.msra.mxu0 0.0
    %1188 = vmatprep.subr.mxu0 0.0
    %1189 = vmatpush1.msra.mxu0 0.0
    %1190 = vmatprep.subr.mxu0 0.0
    %1191 = vmatpush1.msra.mxu0 0.0
    %1192 = vmatprep.subr.mxu0 0.0
    %1193 = vmatpush1.msra.mxu0 0.0
    %1194 = vmatprep.subr.mxu0 0.0
    %1195 = vmatpush1.msra.mxu0 0.0
    %1196 = vmatprep.subr.mxu0 0.0
    %1197 = vmatpush1.msra.mxu0 0.0
    %1198 = vmatprep.subr.mxu0 0.0
    %1199 = vmatpush1.msra.mxu0 0.0
    %1200 = vmatprep.subr.mxu0 0.0
    %1201 = vmatpush1.msra.mxu0 0.0
    %1202 = vmatprep.subr.mxu0 0.0
    %1203 = vmatpush1.msra.mxu0 0.0
    %1204 = vmatprep.subr.mxu0 0.0
    %1205 = vmatpush1.msra.mxu0 0.0
    %1206 = vmatprep.subr.mxu0 0.0
    %1207 = vmatpush1.msra.mxu0 0.0
    %1208 = vmatprep.subr.mxu0 0.0
    %1209 = vmatpush1.msra.mxu0 0.0
    %1210 = vmatprep.subr.mxu0 0.0
    %1211 = vmatpush1.msra.mxu0 0.0
    %1212 = vmatprep.subr.mxu0 0.0
    %1213 = vmatpush1.msra.mxu0 0.0
    %1214 = vmatprep.subr.mxu0 0.0
    %1215 = vmatpush1.msra.mxu0 0.0
    %1216 = vmatprep.subr.mxu0 0.0
    %1217 = vmatpush1.msra.mxu0 0.0
    %1218 = vmatprep.subr.mxu0 0.0
    %1219 = vmatpush1.msra.mxu0 0.0
    %1220 = vmatprep.subr.mxu0 0.0
    %1221 = vmatpush1.msra.mxu0 0.0
    %1222 = vmatprep.subr.mxu0 0.0
    %1223 = vmatpush1.msra.mxu0 0.0
    %1224 = vmatprep.subr.mxu0 0.0
    %1225 = vmatpush1.msra.mxu0 0.0
    %1226 = vmatprep.subr.mxu0 0.0
    %1227 = vmatpush1.msra.mxu0 0.0
    %1228 = vmatprep.subr.mxu0 0.0
    %1229 = vmatpush1.msra.mxu0 0.0
    %1230 = vmatprep.subr.mxu0 0.0
    %1231 = vmatpush1.msra.mxu0 0.0
    %1232 = vmatprep.subr.mxu0 0.0
    %1233 = vmatpush1.msra.mxu0 0.0
    %1234 = vmatprep.subr.mxu0 0.0
    %1235 = vmatpush1.msra.mxu0 0.0
    %1236 = vmatprep.subr.mxu0 0.0
    %1237 = vmatpush1.msra.mxu0 0.0
    %1238 = vmatprep.subr.mxu0 0.0
    %1239 = vmatpush1.msra.mxu0 0.0
    %1240 = vmatprep.subr.mxu0 0.0
    %1241 = vmatpush1.msra.mxu0 0.0
    %1242 = vmatprep.mubr.f32.mxu0 0.0
    %1243 = vmatmul.mubr.f32.gmra.mrb[0].mxu0 %v1173
    %v1244 = vpop.f32.mrb[0].mxu0
    %v1245 = vadd.f32 %v1171, %v1244
    %v1246 = vpop.f32.mrb[0].mxu0
    %1247 = vmatprep.mubr.f32.mxu0 0.0
    %1248 = vmatmul.mubr.f32.gmra.mrb[0].mxu0 %v1176
    %v1249 = vpop.f32.mrb[0].mxu0
    %v1250 = vadd.f32 %v1171, %v1249
    %v1251 = vpop.f32.mrb[0].mxu0
    %1252 = vdwg.mxu0
    %v1253 = vmax.f32 %v1245, 0.0
    %v1254 = vmax.f32 %v1250, 0.0
    %v1255 = vld [vmem:[#allocation6 + $0x60] sm:$0xff]
    %v1256 = vld [vmem:[#allocation6 + $0x68] sm:$0xff]
    %v1257 = vld [vmem:[#allocation6 + $0x70] sm:$0xff]
    %v1258 = vld [vmem:[#allocation6 + $0x78] sm:$0xff]
    %v1259 = vld [vmem:[#allocation7 + $0x5] sm:$0x1]
    %v1260 = vlaneseq
    %v1261 = vshrl.u32 %v1260, 7
    %v1262 = vsub.s32 0, %v1261
    %v1263 = vrot.slane %v1259, %v1262
    %1264 = vmatprep.subr.mxu0 0.0
    %1265 = vmatpush1.xpose.msra.mxu0 %v1255
    %1266 = vmatprep.subr.mxu0 0.0
    %1267 = vmatpush1.xpose.msra.mxu0 %v1256
    %1268 = vmatprep.subr.mxu0 0.0
    %1269 = vmatpush1.xpose.msra.mxu0 %v1257
    %1270 = vmatprep.subr.mxu0 0.0
    %1271 = vmatpush1.xpose.msra.mxu0 %v1258
    %1272 = vmatprep.subr.mxu0 0.0
    %1273 = vmatpush1.xpose.msra.mxu0 0.0
    %1274 = vmatprep.subr.mxu0 0.0
    %1275 = vmatpush1.xpose.msra.mxu0 0.0
    %1276 = vmatprep.subr.mxu0 0.0
    %1277 = vmatpush1.xpose.msra.mxu0 0.0
    %1278 = vmatprep.subr.mxu0 0.0
    %1279 = vmatpush1.xpose.msra.mxu0 0.0
    %1280 = vmatprep.subr.mxu0 0.0
    %1281 = vmatpush1.xpose.msra.mxu0 0.0
    %1282 = vmatprep.subr.mxu0 0.0
    %1283 = vmatpush1.xpose.msra.mxu0 0.0
    %1284 = vmatprep.subr.mxu0 0.0
    %1285 = vmatpush1.xpose.msra.mxu0 0.0
    %1286 = vmatprep.subr.mxu0 0.0
    %1287 = vmatpush1.xpose.msra.mxu0 0.0
    %1288 = vmatprep.subr.mxu0 0.0
    %1289 = vmatpush1.xpose.msra.mxu0 0.0
    %1290 = vmatprep.subr.mxu0 0.0
    %1291 = vmatpush1.xpose.msra.mxu0 0.0
    %1292 = vmatprep.subr.mxu0 0.0
    %1293 = vmatpush1.xpose.msra.mxu0 0.0
    %1294 = vmatprep.subr.mxu0 0.0
    %1295 = vmatpush1.xpose.msra.mxu0 0.0
    %1296 = vmatprep.subr.mxu0 0.0
    %1297 = vmatpush1.xpose.msra.mxu0 0.0
    %1298 = vmatprep.subr.mxu0 0.0
    %1299 = vmatpush1.xpose.msra.mxu0 0.0
    %1300 = vmatprep.subr.mxu0 0.0
    %1301 = vmatpush1.xpose.msra.mxu0 0.0
    %1302 = vmatprep.subr.mxu0 0.0
    %1303 = vmatpush1.xpose.msra.mxu0 0.0
    %1304 = vmatprep.subr.mxu0 0.0
    %1305 = vmatpush1.xpose.msra.mxu0 0.0
    %1306 = vmatprep.subr.mxu0 0.0
    %1307 = vmatpush1.xpose.msra.mxu0 0.0
    %1308 = vmatprep.subr.mxu0 0.0
    %1309 = vmatpush1.xpose.msra.mxu0 0.0
    %1310 = vmatprep.subr.mxu0 0.0
    %1311 = vmatpush1.xpose.msra.mxu0 0.0
    %1312 = vmatprep.subr.mxu0 0.0
    %1313 = vmatpush1.xpose.msra.mxu0 0.0
    %1314 = vmatprep.subr.mxu0 0.0
    %1315 = vmatpush1.xpose.msra.mxu0 0.0
    %1316 = vmatprep.subr.mxu0 0.0
    %1317 = vmatpush1.xpose.msra.mxu0 0.0
    %1318 = vmatprep.subr.mxu0 0.0
    %1319 = vmatpush1.xpose.msra.mxu0 0.0
    %1320 = vmatprep.subr.mxu0 0.0
    %1321 = vmatpush1.xpose.msra.mxu0 0.0
    %1322 = vmatprep.subr.mxu0 0.0
    %1323 = vmatpush1.xpose.msra.mxu0 0.0
    %1324 = vmatprep.subr.mxu0 0.0
    %1325 = vmatpush1.xpose.msra.mxu0 0.0
    %1326 = vmatprep.subr.mxu0 0.0
    %1327 = vmatpush1.xpose.msra.mxu0 0.0
    %1328 = vmatprep.mubr.f32.mxu0 0.0
    %1329 = vmatmul.mubr.f32.gmra.mrb[0].mxu0 %v1253
    %v1330 = vpop.f32.mrb[0].mxu0
    %v1331 = vadd.f32 %v1263, %v1330
    %v1332 = vpop.f32.mrb[0].mxu0
    %1333 = vmatprep.mubr.f32.mxu0 0.0
    %1334 = vmatmul.mubr.f32.gmra.mrb[0].mxu0 %v1254
    %v1335 = vpop.f32.mrb[0].mxu0
    %v1336 = vadd.f32 %v1263, %v1335
    %v1337 = vpop.f32.mrb[0].mxu0
    %1338 = vdwg.mxu0
    %v1339 = vadd.f32 %v1161, %v1331
    %v1340 = vadd.f32 %v1162, %v1336
    %v1341 = vld [vmem:[#allocation7 + $0x6] sm:$0x1]
    %v1342 = vld [vmem:[#allocation7 + $0x7] sm:$0x1]
    %v1343 = vsel %vm89, %v1339, 0.0
    %1344 = vadd.xlane.f32.xlu0 %v1343
    %v1345 = vpop.xlane.xlu0 %1344
    %v1346 = vsel %vm89, %v1340, 0.0
    %1347 = vadd.xlane.f32.xlu0 %v1346
    %v1348 = vpop.xlane.xlu0 %1347
    %v1349 = vmul.f32 %v1345, %v1130
    %v1350 = vmul.f32 %v1348, %v1130
    %v1351 = vsub.f32 %v1339, %v1349
    %v1352 = vsub.f32 %v1340, %v1350
    %v1353 = vmul.f32 %v1351, %v1351
    %v1354 = vmul.f32 %v1352, %v1352
    %v1355 = vsel %vm89, %v1353, 0.0
    %1356 = vadd.xlane.f32.xlu0 %v1355
    %v1357 = vpop.xlane.xlu0 %1356
    %v1358 = vsel %vm89, %v1354, 0.0
    %1359 = vadd.xlane.f32.xlu0 %v1358
    %v1360 = vpop.xlane.xlu0 %1359
    %v1361 = vmul.f32 %v1357, %v1130
    %v1362 = vmul.f32 %v1360, %v1130
    %v1363 = vadd.f32 %v1361, 1e-05
    %v1364 = vadd.f32 %v1362, 1e-05
    %v1365 = vrsqrt.pop %v1363
    %v1366 = vrsqrt.pop %v1364
    %v1367 = vmul.f32 %v1351, %v1365
    %v1368 = vmul.f32 %v1352, %v1366
    %v1369 = vlaneseq
    %v1370 = vshrl.u32 %v1369, 7
    %v1371 = vsub.s32 0, %v1370
    %v1372 = vrot.slane %v1341, %v1371
    %v1373 = vmul.f32 %v1367, %v1372
    %v1374 = vmul.f32 %v1368, %v1372
    %v1375 = vlaneseq
    %v1376 = vshrl.u32 %v1375, 7
    %v1377 = vsub.s32 0, %v1376
    %v1378 = vrot.slane %v1342, %v1377
    %v1379 = vadd.f32 %v1373, %v1378
    %v1380 = vadd.f32 %v1374, %v1378
    %v1381 = vld [vmem:[#allocation6 + $0x80] sm:$0xff]
    %v1382 = vld [vmem:[#allocation6 + $0x88] sm:$0xff]
    %v1383 = vld [vmem:[#allocation6 + $0x90] sm:$0xff]
    %v1384 = vld [vmem:[#allocation6 + $0x98] sm:$0xff]
    %v1385 = vld [vmem:[#allocation7 + $0x8] sm:$0x1]
    %v1386 = vlaneseq
    %v1387 = vshrl.u32 %v1386, 7
    %v1388 = vsub.s32 0, %v1387
    %v1389 = vrot.slane %v1385, %v1388
    %v1391 = vsel %vm89, %v1379, 0
    %v1394 = vsel %vm89, %v1380, 0
    %1396 = vmatprep.subr.mxu0 0.0
    %1397 = vmatpush1.msra.mxu0 %v1381
    %1398 = vmatprep.subr.mxu0 0.0
    %1399 = vmatpush1.msra.mxu0 %v1382
    %1400 = vmatprep.subr.mxu0 0.0
    %1401 = vmatpush1.msra.mxu0 %v1383
    %1402 = vmatprep.subr.mxu0 0.0
    %1403 = vmatpush1.msra.mxu0 %v1384
    %1404 = vmatprep.subr.mxu0 0.0
    %1405 = vmatpush1.msra.mxu0 0.0
    %1406 = vmatprep.subr.mxu0 0.0
    %1407 = vmatpush1.msra.mxu0 0.0
    %1408 = vmatprep.subr.mxu0 0.0
    %1409 = vmatpush1.msra.mxu0 0.0
    %1410 = vmatprep.subr.mxu0 0.0
    %1411 = vmatpush1.msra.mxu0 0.0
    %1412 = vmatprep.subr.mxu0 0.0
    %1413 = vmatpush1.msra.mxu0 0.0
    %1414 = vmatprep.subr.mxu0 0.0
    %1415 = vmatpush1.msra.mxu0 0.0
    %1416 = vmatprep.subr.mxu0 0.0
    %1417 = vmatpush1.msra.mxu0 0.0
    %1418 = vmatprep.subr.mxu0 0.0
    %1419 = vmatpush1.msra.mxu0 0.0
    %1420 = vmatprep.subr.mxu0 0.0
    %1421 = vmatpush1.msra.mxu0 0.0
    %1422 = vmatprep.subr.mxu0 0.0
    %1423 = vmatpush1.msra.mxu0 0.0
    %1424 = vmatprep.subr.mxu0 0.0
    %1425 = vmatpush1.msra.mxu0 0.0
    %1426 = vmatprep.subr.mxu0 0.0
    %1427 = vmatpush1.msra.mxu0 0.0
    %1428 = vmatprep.subr.mxu0 0.0
    %1429 = vmatpush1.msra.mxu0 0.0
    %1430 = vmatprep.subr.mxu0 0.0
    %1431 = vmatpush1.msra.mxu0 0.0
    %1432 = vmatprep.subr.mxu0 0.0
    %1433 = vmatpush1.msra.mxu0 0.0
    %1434 = vmatprep.subr.mxu0 0.0
    %1435 = vmatpush1.msra.mxu0 0.0
    %1436 = vmatprep.subr.mxu0 0.0
    %1437 = vmatpush1.msra.mxu0 0.0
    %1438 = vmatprep.subr.mxu0 0.0
    %1439 = vmatpush1.msra.mxu0 0.0
    %1440 = vmatprep.subr.mxu0 0.0
    %1441 = vmatpush1.msra.mxu0 0.0
    %1442 = vmatprep.subr.mxu0 0.0
    %1443 = vmatpush1.msra.mxu0 0.0
    %1444 = vmatprep.subr.mxu0 0.0
    %1445 = vmatpush1.msra.mxu0 0.0
    %1446 = vmatprep.subr.mxu0 0.0
    %1447 = vmatpush1.msra.mxu0 0.0
    %1448 = vmatprep.subr.mxu0 0.0
    %1449 = vmatpush1.msra.mxu0 0.0
    %1450 = vmatprep.subr.mxu0 0.0
    %1451 = vmatpush1.msra.mxu0 0.0
    %1452 = vmatprep.subr.mxu0 0.0
    %1453 = vmatpush1.msra.mxu0 0.0
    %1454 = vmatprep.subr.mxu0 0.0
    %1455 = vmatpush1.msra.mxu0 0.0
    %1456 = vmatprep.subr.mxu0 0.0
    %1457 = vmatpush1.msra.mxu0 0.0
    %1458 = vmatprep.subr.mxu0 0.0
    %1459 = vmatpush1.msra.mxu0 0.0
    %1460 = vmatprep.mubr.f32.mxu0 0.0
    %1461 = vmatmul.mubr.f32.gmra.mrb[0].mxu0 %v1391
    %v1462 = vpop.f32.mrb[0].mxu0
    %v1463 = vadd.f32 %v1389, %v1462
    %v1464 = vpop.f32.mrb[0].mxu0
    %1465 = vmatprep.mubr.f32.mxu0 0.0
    %1466 = vmatmul.mubr.f32.gmra.mrb[0].mxu0 %v1394
    %v1467 = vpop.f32.mrb[0].mxu0
    %v1468 = vadd.f32 %v1389, %v1467
    %v1469 = vpop.f32.mrb[0].mxu0
    %1470 = vdwg.mxu0
    %vm1471 = vcmask 7168
    %1472 = vst.msk [vmem:[%s4] sm:$0xff] %vm1471, %v1463
    %1473 = vst.msk [vmem:[%s4 + $0x8] sm:$0xff] %vm1471, %v1468
    // Predicated region
    $region34: #{tpu_custom_call.1} parent=1 // pred_check
      _
    $region35: #{tpu_custom_call.1} parent=1 // pred_check_branch
      %1475 = sbr.rel (0) target = $region37
    $region36: #{tpu_custom_call.1} parent=1 // pred_region
      _
    $region37: #{tpu_custom_call.1} parent=1 // pred_fallthru
      _
    // Predicated region
    $region38: #{tpu_custom_call.1} parent=1 // pred_check
      _
    $region39: #{tpu_custom_call.1} parent=1 // pred_check_branch
      %1477 = sbr.rel (0) target = $region41
    $region40: #{tpu_custom_call.1} parent=1 // pred_region
      _
    $region41: #{tpu_custom_call.1} parent=1 // pred_fallthru
      _
    %1478 = vsyncpa [#allocation3], 1
    %1479 = vsyncpa [#allocation5], 1
    %1480 = vsyncpa [#allocation8], 1

</llo_original>
